<compile_context>
chip_gen: v5e
topology: v5e:2x2
jax: 0.10.0
libtpu: 0.0.40
codegen_flags: <defaults>
</compile_context>

<pallas_src>
import functools
import itertools
import math

import numpy as np

import jax
import jax.numpy as jnp
from jax.experimental import pallas as pl
from jax.experimental.pallas import tpu as pltpu  # noqa: F401  (TPU backend; kept for tuning hooks)


# --------------------------------------------------------------------------
# Pallas kernels
# --------------------------------------------------------------------------
def _fused_layer_kernel(*refs, n_streams):
    """One LogicLayer: every per-arity Linear(+bias)+Sigmoid in a single launch.

    refs = (g_0, wt_0, b_0, g_1, wt_1, b_1, ..., out_0, out_1, ...)
      g_s   : [K_s, M_s]  channels-first glued input (M_s = B * N^arity on the lane axis)
      wt_s  : [A, K_s]    transposed weight
      b_s   : [A, 1]      bias
      out_s : [A, M_s]
    """
    ins = refs[: 3 * n_streams]
    outs = refs[3 * n_streams:]
    for s in range(n_streams):
        g = ins[3 * s][...]
        wt = ins[3 * s + 1][...]
        b = ins[3 * s + 2][...]
        acc = jnp.dot(wt, g, preferred_element_type=jnp.float32) + b
        outs[s][...] = jax.nn.sigmoid(acc)


def fused_linear_sigmoid(streams):
    """streams: list of (g [K,M], wt [A,K], b [A]) -> list of sigmoid(wt @ g + b), each [A,M].

    Single pallas_call, no grid (one block); every operand is a full-array VMEM block.
    """
    n = len(streams)
    assert n > 0
    args, out_shapes = [], []
    for g, wt, b in streams:
        args.extend([g, wt, b.reshape(-1, 1)])
        out_shapes.append(jax.ShapeDtypeStruct((wt.shape[0], g.shape[1]), jnp.float32))
    outs = pl.pallas_call(
        functools.partial(_fused_layer_kernel, n_streams=n),
        out_shape=tuple(out_shapes),
    )(*args)
    return list(outs)


def fused_linear_sigmoid_ref(streams):
    """Pure-JAX reference for the layer kernel (correctness check only)."""
    return [jax.nn.sigmoid(jnp.dot(wt, g) + b.reshape(-1, 1)) for g, wt, b in streams]


def _head_kernel(x_ref, w_ref, b_ref, o_ref):
    """Policy head: Linear(D->1) + softmax over actions + clamp(min=1e-20).

    x: [D, B, L] channels-first (L = n*n on the lane axis), w: [D, 1], b: [1, 1] -> o: [B, L].
    """
    x = x_ref[...]
    w = w_ref[...]                                           # [D, 1]
    logits = jnp.sum(x * w[:, :, None], axis=0) + b_ref[...]  # [B, L]
    m = jnp.max(logits, axis=-1, keepdims=True)
    e = jnp.exp(logits - m)
    s = jnp.sum(e, axis=-1, keepdims=True)
    o_ref[...] = jnp.maximum(e / s, 1e-20)


def head_pallas(x_cf, wt, b):
    D, B, L = x_cf.shape
    return pl.pallas_call(
        _head_kernel,
        out_shape=jax.ShapeDtypeStruct((B, L), jnp.float32),
    )(x_cf, wt.reshape(D, 1), b.reshape(1, 1))


def head_ref(x_cf, wt, b):
    """Pure-JAX reference for the head kernel (correctness check only)."""
    logits = jnp.tensordot(wt, x_cf, axes=([1], [0]))[0] + b[0]   # [B, L]
    p = jax.nn.softmax(logits, axis=-1)
    return jnp.maximum(p, 1e-20)


# --------------------------------------------------------------------------
# NLM building blocks — channels-FIRST layout: arity-k tensor is [C, B, N, ..., N]
# (pure data movement stays as XLA glue and fuses with kernel inputs/outputs)
# --------------------------------------------------------------------------
def input_transform_cmp_cf(states):
    """InputTransform('cmp', exclude_self=False): [B,T,C] -> [3C, B, T, T] = cat(x<y, x==y, x>y)."""
    s = jnp.moveaxis(states, -1, 0)          # [C, B, T]
    x = s[:, :, :, None]
    y = s[:, :, None, :]
    return jnp.concatenate([(x < y), (x == y), (x > y)], axis=0).astype(jnp.float32)


def expander_cf(x, n):
    """Expander: add a new trailing object axis of size n (broadcast)."""
    return jnp.broadcast_to(x[..., None], x.shape + (n,))


def _exclude_mask_np(n, arity):
    """Mask over `arity` object axes: 1 iff all object indices mutually distinct."""
    if arity < 2:
        return np.ones((n,) * max(arity, 1), np.float32)
    idx = np.indices((n,) * arity)
    mask = np.ones((n,) * arity, bool)
    for a in range(arity):
        for b in range(arity):
            if a != b:
                mask &= idx[a] != idx[b]
    return mask.astype(np.float32)


def reducer_cf(x, *, exclude_self=True):
    """Reducer: arity-k [C,B,N^k] -> arity-(k-1) [2C,B,N^(k-1)], channels interleaved (e0,f0,e1,f1,...)."""
    arity = x.ndim - 2
    C = x.shape[0]
    N = x.shape[-1]
    if exclude_self:
        m = jnp.asarray(_exclude_mask_np(N, arity))
    else:
        m = jnp.ones((N,) * arity, jnp.float32)
    m = m.reshape((1, 1) + m.shape)          # broadcast over channel, batch
    x0 = x * m                               # fill 0 (for exists / max)
    x1 = x0 + (1.0 - m)                      # fill 1 (for forall / min)
    ex = jnp.max(x0, axis=-1)
    fa = jnp.min(x1, axis=-1)
    out = jnp.stack([ex, fa], axis=1)        # [C, 2, B, ...] -> interleave
    return out.reshape((2 * C,) + ex.shape[1:])


def permutation_cf(x, arity):
    """Permutation: concat all permutations of the object axes along channels (axis 0)."""
    if arity <= 1:
        return x
    obj_axes = tuple(range(2, 2 + arity))
    outs = [jnp.transpose(x, (0, 1) + p) for p in itertools.permutations(obj_axes)]
    return jnp.concatenate(outs, axis=0)


def final_pair_features_cf(f_cf, n):
    """meshgrid_exclude_self: zero the diagonal (i==j) pair features; keep all n*n pairs.

    f_cf: [D, B, n, n] -> [D, B, n*n]  (row-major over (i, j), matching .view(B, -1))."""
    mask = jnp.asarray(1.0 - np.eye(n, dtype=np.float32))
    f = f_cf * mask[None, None, :, :]
    D, B = f.shape[0], f.shape[1]
    return f.reshape(D, B, n * n)


def logic_layer_cf(inputs, input_dims, layer_params, attributes, *, exclude_self=True,
                   use_pallas=True):
    """One LogicLayer: expand(i-1) | self(i) | reduce(i+1) -> permute -> fused Linear+Sigmoid."""
    breadth = len(input_dims) - 1

    # number of objects (T) — taken from any available arity>=1 input
    n = None
    for t in inputs:
        if t is not None and t.ndim > 2:
            n = t.shape[2]
            break

    streams, stream_meta = [], []
    outputs = [None] * (breadth + 1)
    out_dims = [0] * (breadth + 1)
    for i in range(breadth + 1):
        parts = []
        if i > 0 and input_dims[i - 1] > 0:
            parts.append(expander_cf(inputs[i - 1], n))
        if input_dims[i] > 0:
            parts.append(inputs[i])
        if i + 1 <= breadth and input_dims[i + 1] > 0:
            parts.append(reducer_cf(inputs[i + 1], exclude_self=exclude_self))
        if not parts:
            continue
        g = parts[0] if len(parts) == 1 else jnp.concatenate(parts, axis=0)
        g = permutation_cf(g, i)
        wt, b = layer_params[i]
        lead_shape = g.shape[1:]                      # (B, N, ..., N)
        streams.append((g.reshape(g.shape[0], -1), wt, b))
        stream_meta.append((i, lead_shape))

    if use_pallas:
        ys = fused_linear_sigmoid(streams)            # ONE pallas_call for the whole layer
    else:
        ys = fused_linear_sigmoid_ref(streams)

    for (i, lead_shape), y in zip(stream_meta, ys):
        outputs[i] = y.reshape((attributes,) + lead_shape)
        out_dims[i] = attributes
    return outputs, out_dims


# --------------------------------------------------------------------------
# Parameter construction (deterministic, PyTorch-Linear-style init; weights stored transposed)
# --------------------------------------------------------------------------
def _nlm_layer_linear_dims(input_dims, attributes):
    breadth = len(input_dims) - 1
    lin_in, out_dims = [], []
    for i in range(breadth + 1):
        cur = input_dims[i]
        if i > 0:
            cur += input_dims[i - 1]            # Expander
        if i + 1 <= breadth:
            cur += 2 * input_dims[i + 1]        # Reducer (exists + forall)
        if cur == 0:
            lin_in.append(0)
            out_dims.append(0)
        else:
            lin_in.append(cur * math.factorial(i))   # Permutation
            out_dims.append(attributes)
    return lin_in, out_dims


def _init_linear_t(key, fan_in, fan_out):
    kw, kb = jax.random.split(key)
    bound = 1.0 / math.sqrt(fan_in)
    wt = jax.random.uniform(kw, (fan_out, fan_in), jnp.float32, -bound, bound)
    b = jax.random.uniform(kb, (fan_out,), jnp.float32, -bound, bound)
    return wt, b


def init_params(key, depth, breadth, attributes, input_dims0):
    params, dims = [], list(input_dims0)
    for _ in range(depth):
        lin_in, out_dims = _nlm_layer_linear_dims(dims, attributes)
        layer_params = []
        for i in range(breadth + 1):
            if lin_in[i] == 0:
                layer_params.append(None)
            else:
                key, sub = jax.random.split(key)
                layer_params.append(_init_linear_t(sub, lin_in[i], attributes))
        params.append(layer_params)
        dims = out_dims
    key, sub = jax.random.split(key)
    pred_params = _init_linear_t(sub, dims[2], 1)     # LogitsInference(D, 1, [])
    return params, pred_params, dims


# --------------------------------------------------------------------------
# Model_NLM.forward  (concat_worlds=False path; feature_axis = 2; model='nlm')
# --------------------------------------------------------------------------
# TODO(synk): concat_worlds=True branch, the 'memnet' feature branch and REINFORCELoss
#             (training-only) are not implemented; the configured forward path is complete.
def model_nlm_forward(states, nlm_params, pred_params, *, breadth, attributes,
                      exclude_self=True, use_pallas=True):
    B, total, _ = states.shape
    assert total % 2 == 0
    nr_objects = total // 2

    f2 = input_transform_cmp_cf(states)               # [3*input_dim, B, total, total]
    inputs = [None] * (breadth + 1)
    inputs[2] = f2
    dims = [0] * (breadth + 1)
    dims[2] = f2.shape[0]

    for layer_params in nlm_params:                   # LogicMachine: 1 pallas_call per layer
        inputs, dims = logic_layer_cf(inputs, dims, layer_params, attributes,
                                      exclude_self=exclude_self, use_pallas=use_pallas)

    f = inputs[2]                                     # features[feature_axis=2]  [D, B, T, T]
    f = f[:, :, :nr_objects, :nr_objects]             # current world only
    x = final_pair_features_cf(f, nr_objects)         # [D, B, n*n] (diagonal zeroed, kept)

    wt, b = pred_params
    if use_pallas:
        return head_pallas(x, wt, b)                  # Linear + softmax + clamp, one launch
    return head_ref(x, wt, b)


# --------------------------------------------------------------------------
if __name__ == "__main__":
    B, nr_objects, input_dim = 2, 4, 6        # input_dim = 4 + 2 (as in Model_NLM.__init__)
    total = 2 * nr_objects                    # initial + target world entities
    depth, breadth, attributes = 3, 3, 8      # nlm_depth / nlm_breadth / nlm_attributes

    key = jax.random.PRNGKey(0)
    k_states, k_params = jax.random.split(key)
    states = jax.random.uniform(k_states, (B, total, input_dim), jnp.float32)

    transformed_dim = 3 * input_dim           # InputTransform('cmp')
    input_dims0 = [0] * (breadth + 1)
    input_dims0[2] = transformed_dim
    nlm_params, pred_params, _ = init_params(k_params, depth, breadth,
                                             attributes, input_dims0)

    fwd = jax.jit(functools.partial(model_nlm_forward, breadth=breadth,
                                    attributes=attributes, use_pallas=True))
    fwd_ref = jax.jit(functools.partial(model_nlm_forward, breadth=breadth,
                                        attributes=attributes, use_pallas=False))

    policy = fwd(states, nlm_params, pred_params)
    jax.block_until_ready(policy)
    policy_ref = fwd_ref(states, nlm_params, pred_params)
    jax.block_until_ready(policy_ref)

    # policy is a softmax over all n*n ordered (i, j) pairs (diagonal features zeroed),
    # exactly like the PyTorch module's .view(B, -1) + softmax + clamp.
    assert policy.shape == (B, nr_objects * nr_objects)
    assert bool(jnp.all(policy > 0.0)) and bool(jnp.all(jnp.isfinite(policy)))
    assert bool(jnp.all(jnp.abs(jnp.sum(policy, axis=-1) - 1.0) < 1e-3))
    assert float(jnp.max(jnp.abs(policy - policy_ref))) < 1e-4
    print("KERNEL_OK")
</pallas_src>

<mosaic_0001>
module attributes {stable_mosaic.version = 11 : i64} {
  func.func @_fused_layer_kernel(%arg0: memref<36x16xf32, #tpu.memory_space<vmem>>, %arg1: memref<8x36xf32, #tpu.memory_space<vmem>>, %arg2: memref<8x1xf32, #tpu.memory_space<vmem>>, %arg3: memref<36x128xf32, #tpu.memory_space<vmem>>, %arg4: memref<8x36xf32, #tpu.memory_space<vmem>>, %arg5: memref<8x1xf32, #tpu.memory_space<vmem>>, %arg6: memref<108x1024xf32, #tpu.memory_space<vmem>>, %arg7: memref<8x108xf32, #tpu.memory_space<vmem>>, %arg8: memref<8x1xf32, #tpu.memory_space<vmem>>, %arg9: memref<8x16xf32, #tpu.memory_space<vmem>>, %arg10: memref<8x128xf32, #tpu.memory_space<vmem>>, %arg11: memref<8x1024xf32, #tpu.memory_space<vmem>>) attributes {dimension_semantics = [], scalar_prefetch = 0 : i64, scratch_operands = 0 : i64, tpu.core_type = #tpu.core_type<tc>} {
    %c0 = arith.constant 0 : index
    %c0_0 = arith.constant 0 : index
    %0 = vector.load %arg0[%c0, %c0_0] : memref<36x16xf32, #tpu.memory_space<vmem>>, vector<36x16xf32>
    %c0_1 = arith.constant 0 : index
    %c0_2 = arith.constant 0 : index
    %1 = vector.load %arg1[%c0_1, %c0_2] : memref<8x36xf32, #tpu.memory_space<vmem>>, vector<8x36xf32>
    %c0_3 = arith.constant 0 : index
    %c0_4 = arith.constant 0 : index
    %2 = vector.load %arg2[%c0_3, %c0_4] : memref<8x1xf32, #tpu.memory_space<vmem>>, vector<8x1xf32>
    %cst = arith.constant dense<0.000000e+00> : vector<8x16xf32>
    %3 = tpu.matmul %1, %0, %cst {dimension_numbers = #tpu.dot_dimension_numbers<[1], [0], [0], [1], [0, 0, 1, 1], [], []>} : vector<8x36xf32>, vector<36x16xf32>, vector<8x16xf32> -> vector<8x16xf32>
    %4 = vector.broadcast %2 : vector<8x1xf32> to vector<8x16xf32>
    %5 = arith.addf %3, %4 : vector<8x16xf32>
    %6 = arith.negf %5 : vector<8x16xf32>
    %7 = math.exp %6 : vector<8x16xf32>
    %cst_5 = arith.constant 1.000000e+00 : f32
    %8 = vector.broadcast %cst_5 : f32 to vector<8x16xf32>
    %9 = arith.addf %8, %7 : vector<8x16xf32>
    %10 = arith.divf %8, %9 : vector<8x16xf32>
    %c0_6 = arith.constant 0 : index
    %c0_7 = arith.constant 0 : index
    %11 = vector.load %arg9[%c0_6, %c0_7] : memref<8x16xf32, #tpu.memory_space<vmem>>, vector<8x16xf32>
    tpu.vector_store %arg9[%c0_6, %c0_7], %10 {strides = array<i32>} : memref<8x16xf32, #tpu.memory_space<vmem>>, vector<8x16xf32>,
    %c0_8 = arith.constant 0 : index
    %c0_9 = arith.constant 0 : index
    %12 = vector.load %arg3[%c0_8, %c0_9] : memref<36x128xf32, #tpu.memory_space<vmem>>, vector<36x128xf32>
    %c0_10 = arith.constant 0 : index
    %c0_11 = arith.constant 0 : index
    %13 = vector.load %arg4[%c0_10, %c0_11] : memref<8x36xf32, #tpu.memory_space<vmem>>, vector<8x36xf32>
    %c0_12 = arith.constant 0 : index
    %c0_13 = arith.constant 0 : index
    %14 = vector.load %arg5[%c0_12, %c0_13] : memref<8x1xf32, #tpu.memory_space<vmem>>, vector<8x1xf32>
    %cst_14 = arith.constant dense<0.000000e+00> : vector<8x128xf32>
    %15 = tpu.matmul %13, %12, %cst_14 {dimension_numbers = #tpu.dot_dimension_numbers<[1], [0], [0], [1], [0, 0, 1, 1], [], []>} : vector<8x36xf32>, vector<36x128xf32>, vector<8x128xf32> -> vector<8x128xf32>
    %16 = vector.broadcast %14 : vector<8x1xf32> to vector<8x128xf32>
    %17 = arith.addf %15, %16 : vector<8x128xf32>
    %18 = arith.negf %17 : vector<8x128xf32>
    %19 = math.exp %18 : vector<8x128xf32>
    %cst_15 = arith.constant 1.000000e+00 : f32
    %20 = vector.broadcast %cst_15 : f32 to vector<8x128xf32>
    %21 = arith.addf %20, %19 : vector<8x128xf32>
    %22 = arith.divf %20, %21 : vector<8x128xf32>
    %c0_16 = arith.constant 0 : index
    %c0_17 = arith.constant 0 : index
    %23 = vector.load %arg10[%c0_16, %c0_17] : memref<8x128xf32, #tpu.memory_space<vmem>>, vector<8x128xf32>
    tpu.vector_store %arg10[%c0_16, %c0_17], %22 {strides = array<i32>} : memref<8x128xf32, #tpu.memory_space<vmem>>, vector<8x128xf32>,
    %c0_18 = arith.constant 0 : index
    %c0_19 = arith.constant 0 : index
    %24 = vector.load %arg6[%c0_18, %c0_19] : memref<108x1024xf32, #tpu.memory_space<vmem>>, vector<108x1024xf32>
    %c0_20 = arith.constant 0 : index
    %c0_21 = arith.constant 0 : index
    %25 = vector.load %arg7[%c0_20, %c0_21] : memref<8x108xf32, #tpu.memory_space<vmem>>, vector<8x108xf32>
    %c0_22 = arith.constant 0 : index
    %c0_23 = arith.constant 0 : index
    %26 = vector.load %arg8[%c0_22, %c0_23] : memref<8x1xf32, #tpu.memory_space<vmem>>, vector<8x1xf32>
    %cst_24 = arith.constant dense<0.000000e+00> : vector<8x1024xf32>
    %27 = tpu.matmul %25, %24, %cst_24 {dimension_numbers = #tpu.dot_dimension_numbers<[1], [0], [0], [1], [0, 0, 1, 1], [], []>} : vector<8x108xf32>, vector<108x1024xf32>, vector<8x1024xf32> -> vector<8x1024xf32>
    %28 = vector.broadcast %26 : vector<8x1xf32> to vector<8x1024xf32>
    %29 = arith.addf %27, %28 : vector<8x1024xf32>
    %30 = arith.negf %29 : vector<8x1024xf32>
    %31 = math.exp %30 : vector<8x1024xf32>
    %cst_25 = arith.constant 1.000000e+00 : f32
    %32 = vector.broadcast %cst_25 : f32 to vector<8x1024xf32>
    %33 = arith.addf %32, %31 : vector<8x1024xf32>
    %34 = arith.divf %32, %33 : vector<8x1024xf32>
    %c0_26 = arith.constant 0 : index
    %c0_27 = arith.constant 0 : index
    %35 = vector.load %arg11[%c0_26, %c0_27] : memref<8x1024xf32, #tpu.memory_space<vmem>>, vector<8x1024xf32>
    tpu.vector_store %arg11[%c0_26, %c0_27], %34 {strides = array<i32>} : memref<8x1024xf32, #tpu.memory_space<vmem>>, vector<8x1024xf32>,
    return
  }
}

module attributes {stable_mosaic.version = 11 : i64} {
  func.func @_fused_layer_kernel(%arg0: memref<16x2xf32, #tpu.memory_space<vmem>>, %arg1: memref<8x16xf32, #tpu.memory_space<vmem>>, %arg2: memref<8x1xf32, #tpu.memory_space<vmem>>, %arg3: memref<24x16xf32, #tpu.memory_space<vmem>>, %arg4: memref<8x24xf32, #tpu.memory_space<vmem>>, %arg5: memref<8x1xf32, #tpu.memory_space<vmem>>, %arg6: memref<64x128xf32, #tpu.memory_space<vmem>>, %arg7: memref<8x64xf32, #tpu.memory_space<vmem>>, %arg8: memref<8x1xf32, #tpu.memory_space<vmem>>, %arg9: memref<96x1024xf32, #tpu.memory_space<vmem>>, %arg10: memref<8x96xf32, #tpu.memory_space<vmem>>, %arg11: memref<8x1xf32, #tpu.memory_space<vmem>>, %arg12: memref<8x2xf32, #tpu.memory_space<vmem>>, %arg13: memref<8x16xf32, #tpu.memory_space<vmem>>, %arg14: memref<8x128xf32, #tpu.memory_space<vmem>>, %arg15: memref<8x1024xf32, #tpu.memory_space<vmem>>) attributes {dimension_semantics = [], scalar_prefetch = 0 : i64, scratch_operands = 0 : i64, tpu.core_type = #tpu.core_type<tc>} {
    %c0 = arith.constant 0 : index
    %c0_0 = arith.constant 0 : index
    %0 = vector.load %arg0[%c0, %c0_0] : memref<16x2xf32, #tpu.memory_space<vmem>>, vector<16x2xf32>
    %c0_1 = arith.constant 0 : index
    %c0_2 = arith.constant 0 : index
    %1 = vector.load %arg1[%c0_1, %c0_2] : memref<8x16xf32, #tpu.memory_space<vmem>>, vector<8x16xf32>
    %c0_3 = arith.constant 0 : index
    %c0_4 = arith.constant 0 : index
    %2 = vector.load %arg2[%c0_3, %c0_4] : memref<8x1xf32, #tpu.memory_space<vmem>>, vector<8x1xf32>
    %cst = arith.constant dense<0.000000e+00> : vector<8x2xf32>
    %3 = tpu.matmul %1, %0, %cst {dimension_numbers = #tpu.dot_dimension_numbers<[1], [0], [0], [1], [0, 0, 1, 1], [], []>} : vector<8x16xf32>, vector<16x2xf32>, vector<8x2xf32> -> vector<8x2xf32>
    %4 = vector.broadcast %2 : vector<8x1xf32> to vector<8x2xf32>
    %5 = arith.addf %3, %4 : vector<8x2xf32>
    %6 = arith.negf %5 : vector<8x2xf32>
    %7 = math.exp %6 : vector<8x2xf32>
    %cst_5 = arith.constant 1.000000e+00 : f32
    %8 = vector.broadcast %cst_5 : f32 to vector<8x2xf32>
    %9 = arith.addf %8, %7 : vector<8x2xf32>
    %10 = arith.divf %8, %9 : vector<8x2xf32>
    %c0_6 = arith.constant 0 : index
    %c0_7 = arith.constant 0 : index
    %11 = vector.load %arg12[%c0_6, %c0_7] : memref<8x2xf32, #tpu.memory_space<vmem>>, vector<8x2xf32>
    tpu.vector_store %arg12[%c0_6, %c0_7], %10 {strides = array<i32>} : memref<8x2xf32, #tpu.memory_space<vmem>>, vector<8x2xf32>,
    %c0_8 = arith.constant 0 : index
    %c0_9 = arith.constant 0 : index
    %12 = vector.load %arg3[%c0_8, %c0_9] : memref<24x16xf32, #tpu.memory_space<vmem>>, vector<24x16xf32>
    %c0_10 = arith.constant 0 : index
    %c0_11 = arith.constant 0 : index
    %13 = vector.load %arg4[%c0_10, %c0_11] : memref<8x24xf32, #tpu.memory_space<vmem>>, vector<8x24xf32>
    %c0_12 = arith.constant 0 : index
    %c0_13 = arith.constant 0 : index
    %14 = vector.load %arg5[%c0_12, %c0_13] : memref<8x1xf32, #tpu.memory_space<vmem>>, vector<8x1xf32>
    %cst_14 = arith.constant dense<0.000000e+00> : vector<8x16xf32>
    %15 = tpu.matmul %13, %12, %cst_14 {dimension_numbers = #tpu.dot_dimension_numbers<[1], [0], [0], [1], [0, 0, 1, 1], [], []>} : vector<8x24xf32>, vector<24x16xf32>, vector<8x16xf32> -> vector<8x16xf32>
    %16 = vector.broadcast %14 : vector<8x1xf32> to vector<8x16xf32>
    %17 = arith.addf %15, %16 : vector<8x16xf32>
    %18 = arith.negf %17 : vector<8x16xf32>
    %19 = math.exp %18 : vector<8x16xf32>
    %cst_15 = arith.constant 1.000000e+00 : f32
    %20 = vector.broadcast %cst_15 : f32 to vector<8x16xf32>
    %21 = arith.addf %20, %19 : vector<8x16xf32>
    %22 = arith.divf %20, %21 : vector<8x16xf32>
    %c0_16 = arith.constant 0 : index
    %c0_17 = arith.constant 0 : index
    %23 = vector.load %arg13[%c0_16, %c0_17] : memref<8x16xf32, #tpu.memory_space<vmem>>, vector<8x16xf32>
    tpu.vector_store %arg13[%c0_16, %c0_17], %22 {strides = array<i32>} : memref<8x16xf32, #tpu.memory_space<vmem>>, vector<8x16xf32>,
    %c0_18 = arith.constant 0 : index
    %c0_19 = arith.constant 0 : index
    %24 = vector.load %arg6[%c0_18, %c0_19] : memref<64x128xf32, #tpu.memory_space<vmem>>, vector<64x128xf32>
    %c0_20 = arith.constant 0 : index
    %c0_21 = arith.constant 0 : index
    %25 = vector.load %arg7[%c0_20, %c0_21] : memref<8x64xf32, #tpu.memory_space<vmem>>, vector<8x64xf32>
    %c0_22 = arith.constant 0 : index
    %c0_23 = arith.constant 0 : index
    %26 = vector.load %arg8[%c0_22, %c0_23] : memref<8x1xf32, #tpu.memory_space<vmem>>, vector<8x1xf32>
    %cst_24 = arith.constant dense<0.000000e+00> : vector<8x128xf32>
    %27 = tpu.matmul %25, %24, %cst_24 {dimension_numbers = #tpu.dot_dimension_numbers<[1], [0], [0], [1], [0, 0, 1, 1], [], []>} : vector<8x64xf32>, vector<64x128xf32>, vector<8x128xf32> -> vector<8x128xf32>
    %28 = vector.broadcast %26 : vector<8x1xf32> to vector<8x128xf32>
    %29 = arith.addf %27, %28 : vector<8x128xf32>
    %30 = arith.negf %29 : vector<8x128xf32>
    %31 = math.exp %30 : vector<8x128xf32>
    %cst_25 = arith.constant 1.000000e+00 : f32
    %32 = vector.broadcast %cst_25 : f32 to vector<8x128xf32>
    %33 = arith.addf %32, %31 : vector<8x128xf32>
    %34 = arith.divf %32, %33 : vector<8x128xf32>
    %c0_26 = arith.constant 0 : index
    %c0_27 = arith.constant 0 : index
    %35 = vector.load %arg14[%c0_26, %c0_27] : memref<8x128xf32, #tpu.memory_space<vmem>>, vector<8x128xf32>
    tpu.vector_store %arg14[%c0_26, %c0_27], %34 {strides = array<i32>} : memref<8x128xf32, #tpu.memory_space<vmem>>, vector<8x128xf32>,
    %c0_28 = arith.constant 0 : index
    %c0_29 = arith.constant 0 : index
    %36 = vector.load %arg9[%c0_28, %c0_29] : memref<96x1024xf32, #tpu.memory_space<vmem>>, vector<96x1024xf32>
    %c0_30 = arith.constant 0 : index
    %c0_31 = arith.constant 0 : index
    %37 = vector.load %arg10[%c0_30, %c0_31] : memref<8x96xf32, #tpu.memory_space<vmem>>, vector<8x96xf32>
    %c0_32 = arith.constant 0 : index
    %c0_33 = arith.constant 0 : index
    %38 = vector.load %arg11[%c0_32, %c0_33] : memref<8x1xf32, #tpu.memory_space<vmem>>, vector<8x1xf32>
    %cst_34 = arith.constant dense<0.000000e+00> : vector<8x1024xf32>
    %39 = tpu.matmul %37, %36, %cst_34 {dimension_numbers = #tpu.dot_dimension_numbers<[1], [0], [0], [1], [0, 0, 1, 1], [], []>} : vector<8x96xf32>, vector<96x1024xf32>, vector<8x1024xf32> -> vector<8x1024xf32>
    %40 = vector.broadcast %38 : vector<8x1xf32> to vector<8x1024xf32>
    %41 = arith.addf %39, %40 : vector<8x1024xf32>
    %42 = arith.negf %41 : vector<8x1024xf32>
    %43 = math.exp %42 : vector<8x1024xf32>
    %cst_35 = arith.constant 1.000000e+00 : f32
    %44 = vector.broadcast %cst_35 : f32 to vector<8x1024xf32>
    %45 = arith.addf %44, %43 : vector<8x1024xf32>
    %46 = arith.divf %44, %45 : vector<8x1024xf32>
    %c0_36 = arith.constant 0 : index
    %c0_37 = arith.constant 0 : index
    %47 = vector.load %arg15[%c0_36, %c0_37] : memref<8x1024xf32, #tpu.memory_space<vmem>>, vector<8x1024xf32>
    tpu.vector_store %arg15[%c0_36, %c0_37], %46 {strides = array<i32>} : memref<8x1024xf32, #tpu.memory_space<vmem>>, vector<8x1024xf32>,
    return
  }
}

module attributes {stable_mosaic.version = 11 : i64} {
  func.func @_fused_layer_kernel(%arg0: memref<24x2xf32, #tpu.memory_space<vmem>>, %arg1: memref<8x24xf32, #tpu.memory_space<vmem>>, %arg2: memref<8x1xf32, #tpu.memory_space<vmem>>, %arg3: memref<32x16xf32, #tpu.memory_space<vmem>>, %arg4: memref<8x32xf32, #tpu.memory_space<vmem>>, %arg5: memref<8x1xf32, #tpu.memory_space<vmem>>, %arg6: memref<64x128xf32, #tpu.memory_space<vmem>>, %arg7: memref<8x64xf32, #tpu.memory_space<vmem>>, %arg8: memref<8x1xf32, #tpu.memory_space<vmem>>, %arg9: memref<96x1024xf32, #tpu.memory_space<vmem>>, %arg10: memref<8x96xf32, #tpu.memory_space<vmem>>, %arg11: memref<8x1xf32, #tpu.memory_space<vmem>>, %arg12: memref<8x2xf32, #tpu.memory_space<vmem>>, %arg13: memref<8x16xf32, #tpu.memory_space<vmem>>, %arg14: memref<8x128xf32, #tpu.memory_space<vmem>>, %arg15: memref<8x1024xf32, #tpu.memory_space<vmem>>) attributes {dimension_semantics = [], scalar_prefetch = 0 : i64, scratch_operands = 0 : i64, tpu.core_type = #tpu.core_type<tc>} {
    %c0 = arith.constant 0 : index
    %c0_0 = arith.constant 0 : index
    %0 = vector.load %arg0[%c0, %c0_0] : memref<24x2xf32, #tpu.memory_space<vmem>>, vector<24x2xf32>
    %c0_1 = arith.constant 0 : index
    %c0_2 = arith.constant 0 : index
    %1 = vector.load %arg1[%c0_1, %c0_2] : memref<8x24xf32, #tpu.memory_space<vmem>>, vector<8x24xf32>
    %c0_3 = arith.constant 0 : index
    %c0_4 = arith.constant 0 : index
    %2 = vector.load %arg2[%c0_3, %c0_4] : memref<8x1xf32, #tpu.memory_space<vmem>>, vector<8x1xf32>
    %cst = arith.constant dense<0.000000e+00> : vector<8x2xf32>
    %3 = tpu.matmul %1, %0, %cst {dimension_numbers = #tpu.dot_dimension_numbers<[1], [0], [0], [1], [0, 0, 1, 1], [], []>} : vector<8x24xf32>, vector<24x2xf32>, vector<8x2xf32> -> vector<8x2xf32>
    %4 = vector.broadcast %2 : vector<8x1xf32> to vector<8x2xf32>
    %5 = arith.addf %3, %4 : vector<8x2xf32>
    %6 = arith.negf %5 : vector<8x2xf32>
    %7 = math.exp %6 : vector<8x2xf32>
    %cst_5 = arith.constant 1.000000e+00 : f32
    %8 = vector.broadcast %cst_5 : f32 to vector<8x2xf32>
    %9 = arith.addf %8, %7 : vector<8x2xf32>
    %10 = arith.divf %8, %9 : vector<8x2xf32>
    %c0_6 = arith.constant 0 : index
    %c0_7 = arith.constant 0 : index
    %11 = vector.load %arg12[%c0_6, %c0_7] : memref<8x2xf32, #tpu.memory_space<vmem>>, vector<8x2xf32>
    tpu.vector_store %arg12[%c0_6, %c0_7], %10 {strides = array<i32>} : memref<8x2xf32, #tpu.memory_space<vmem>>, vector<8x2xf32>,
    %c0_8 = arith.constant 0 : index
    %c0_9 = arith.constant 0 : index
    %12 = vector.load %arg3[%c0_8, %c0_9] : memref<32x16xf32, #tpu.memory_space<vmem>>, vector<32x16xf32>
    %c0_10 = arith.constant 0 : index
    %c0_11 = arith.constant 0 : index
    %13 = vector.load %arg4[%c0_10, %c0_11] : memref<8x32xf32, #tpu.memory_space<vmem>>, vector<8x32xf32>
    %c0_12 = arith.constant 0 : index
    %c0_13 = arith.constant 0 : index
    %14 = vector.load %arg5[%c0_12, %c0_13] : memref<8x1xf32, #tpu.memory_space<vmem>>, vector<8x1xf32>
    %cst_14 = arith.constant dense<0.000000e+00> : vector<8x16xf32>
    %15 = tpu.matmul %13, %12, %cst_14 {dimension_numbers = #tpu.dot_dimension_numbers<[1], [0], [0], [1], [0, 0, 1, 1], [], []>} : vector<8x32xf32>, vector<32x16xf32>, vector<8x16xf32> -> vector<8x16xf32>
    %16 = vector.broadcast %14 : vector<8x1xf32> to vector<8x16xf32>
    %17 = arith.addf %15, %16 : vector<8x16xf32>
    %18 = arith.negf %17 : vector<8x16xf32>
    %19 = math.exp %18 : vector<8x16xf32>
    %cst_15 = arith.constant 1.000000e+00 : f32
    %20 = vector.broadcast %cst_15 : f32 to vector<8x16xf32>
    %21 = arith.addf %20, %19 : vector<8x16xf32>
    %22 = arith.divf %20, %21 : vector<8x16xf32>
    %c0_16 = arith.constant 0 : index
    %c0_17 = arith.constant 0 : index
    %23 = vector.load %arg13[%c0_16, %c0_17] : memref<8x16xf32, #tpu.memory_space<vmem>>, vector<8x16xf32>
    tpu.vector_store %arg13[%c0_16, %c0_17], %22 {strides = array<i32>} : memref<8x16xf32, #tpu.memory_space<vmem>>, vector<8x16xf32>,
    %c0_18 = arith.constant 0 : index
    %c0_19 = arith.constant 0 : index
    %24 = vector.load %arg6[%c0_18, %c0_19] : memref<64x128xf32, #tpu.memory_space<vmem>>, vector<64x128xf32>
    %c0_20 = arith.constant 0 : index
    %c0_21 = arith.constant 0 : index
    %25 = vector.load %arg7[%c0_20, %c0_21] : memref<8x64xf32, #tpu.memory_space<vmem>>, vector<8x64xf32>
    %c0_22 = arith.constant 0 : index
    %c0_23 = arith.constant 0 : index
    %26 = vector.load %arg8[%c0_22, %c0_23] : memref<8x1xf32, #tpu.memory_space<vmem>>, vector<8x1xf32>
    %cst_24 = arith.constant dense<0.000000e+00> : vector<8x128xf32>
    %27 = tpu.matmul %25, %24, %cst_24 {dimension_numbers = #tpu.dot_dimension_numbers<[1], [0], [0], [1], [0, 0, 1, 1], [], []>} : vector<8x64xf32>, vector<64x128xf32>, vector<8x128xf32> -> vector<8x128xf32>
    %28 = vector.broadcast %26 : vector<8x1xf32> to vector<8x128xf32>
    %29 = arith.addf %27, %28 : vector<8x128xf32>
    %30 = arith.negf %29 : vector<8x128xf32>
    %31 = math.exp %30 : vector<8x128xf32>
    %cst_25 = arith.constant 1.000000e+00 : f32
    %32 = vector.broadcast %cst_25 : f32 to vector<8x128xf32>
    %33 = arith.addf %32, %31 : vector<8x128xf32>
    %34 = arith.divf %32, %33 : vector<8x128xf32>
    %c0_26 = arith.constant 0 : index
    %c0_27 = arith.constant 0 : index
    %35 = vector.load %arg14[%c0_26, %c0_27] : memref<8x128xf32, #tpu.memory_space<vmem>>, vector<8x128xf32>
    tpu.vector_store %arg14[%c0_26, %c0_27], %34 {strides = array<i32>} : memref<8x128xf32, #tpu.memory_space<vmem>>, vector<8x128xf32>,
    %c0_28 = arith.constant 0 : index
    %c0_29 = arith.constant 0 : index
    %36 = vector.load %arg9[%c0_28, %c0_29] : memref<96x1024xf32, #tpu.memory_space<vmem>>, vector<96x1024xf32>
    %c0_30 = arith.constant 0 : index
    %c0_31 = arith.constant 0 : index
    %37 = vector.load %arg10[%c0_30, %c0_31] : memref<8x96xf32, #tpu.memory_space<vmem>>, vector<8x96xf32>
    %c0_32 = arith.constant 0 : index
    %c0_33 = arith.constant 0 : index
    %38 = vector.load %arg11[%c0_32, %c0_33] : memref<8x1xf32, #tpu.memory_space<vmem>>, vector<8x1xf32>
    %cst_34 = arith.constant dense<0.000000e+00> : vector<8x1024xf32>
    %39 = tpu.matmul %37, %36, %cst_34 {dimension_numbers = #tpu.dot_dimension_numbers<[1], [0], [0], [1], [0, 0, 1, 1], [], []>} : vector<8x96xf32>, vector<96x1024xf32>, vector<8x1024xf32> -> vector<8x1024xf32>
    %40 = vector.broadcast %38 : vector<8x1xf32> to vector<8x1024xf32>
    %41 = arith.addf %39, %40 : vector<8x1024xf32>
    %42 = arith.negf %41 : vector<8x1024xf32>
    %43 = math.exp %42 : vector<8x1024xf32>
    %cst_35 = arith.constant 1.000000e+00 : f32
    %44 = vector.broadcast %cst_35 : f32 to vector<8x1024xf32>
    %45 = arith.addf %44, %43 : vector<8x1024xf32>
    %46 = arith.divf %44, %45 : vector<8x1024xf32>
    %c0_36 = arith.constant 0 : index
    %c0_37 = arith.constant 0 : index
    %47 = vector.load %arg15[%c0_36, %c0_37] : memref<8x1024xf32, #tpu.memory_space<vmem>>, vector<8x1024xf32>
    tpu.vector_store %arg15[%c0_36, %c0_37], %46 {strides = array<i32>} : memref<8x1024xf32, #tpu.memory_space<vmem>>, vector<8x1024xf32>,
    return
  }
}

module attributes {stable_mosaic.version = 11 : i64} {
  func.func @_head_kernel(%arg0: memref<8x2x16xf32, #tpu.memory_space<vmem>>, %arg1: memref<8x1xf32, #tpu.memory_space<vmem>>, %arg2: memref<1x1xf32, #tpu.memory_space<vmem>>, %arg3: memref<2x16xf32, #tpu.memory_space<vmem>>) attributes {dimension_semantics = [], scalar_prefetch = 0 : i64, scratch_operands = 0 : i64, tpu.core_type = #tpu.core_type<tc>} {
    %c0 = arith.constant 0 : index
    %c0_0 = arith.constant 0 : index
    %c0_1 = arith.constant 0 : index
    %0 = vector.load %arg0[%c0, %c0_0, %c0_1] : memref<8x2x16xf32, #tpu.memory_space<vmem>>, vector<8x2x16xf32>
    %c0_2 = arith.constant 0 : index
    %c0_3 = arith.constant 0 : index
    %1 = vector.load %arg1[%c0_2, %c0_3] : memref<8x1xf32, #tpu.memory_space<vmem>>, vector<8x1xf32>
    %2 = vector.shape_cast %1 : vector<8x1xf32> to vector<8x1x1xf32>
    %3 = vector.broadcast %2 : vector<8x1x1xf32> to vector<8x2x16xf32>
    %4 = arith.mulf %0, %3 : vector<8x2x16xf32>
    %cst = arith.constant dense<0.000000e+00> : vector<2x16xf32>
    %5 = vector.multi_reduction <add>, %4, %cst [0] : vector<8x2x16xf32> to vector<2x16xf32>
    %c0_4 = arith.constant 0 : index
    %c0_5 = arith.constant 0 : index
    %6 = vector.load %arg2[%c0_4, %c0_5] : memref<1x1xf32, #tpu.memory_space<vmem>>, vector<1x1xf32>
    %7 = vector.broadcast %6 : vector<1x1xf32> to vector<2x16xf32>
    %8 = arith.addf %5, %7 : vector<2x16xf32>
    %cst_6 = arith.constant dense<0xFF800000> : vector<2xf32>
    %9 = vector.multi_reduction <maximumf>, %8, %cst_6 [1] : vector<2x16xf32> to vector<2xf32>
    %10 = vector.shape_cast %9 : vector<2xf32> to vector<2x1xf32>
    %11 = vector.broadcast %10 : vector<2x1xf32> to vector<2x16xf32>
    %12 = arith.subf %8, %11 : vector<2x16xf32>
    %13 = math.exp %12 : vector<2x16xf32>
    %cst_7 = arith.constant dense<0.000000e+00> : vector<2xf32>
    %14 = vector.multi_reduction <add>, %13, %cst_7 [1] : vector<2x16xf32> to vector<2xf32>
    %15 = vector.shape_cast %14 : vector<2xf32> to vector<2x1xf32>
    %16 = vector.broadcast %15 : vector<2x1xf32> to vector<2x16xf32>
    %17 = arith.divf %13, %16 : vector<2x16xf32>
    %cst_8 = arith.constant 9.99999968E-21 : f32
    %18 = vector.broadcast %cst_8 : f32 to vector<2x16xf32>
    %19 = arith.maximumf %17, %18 : vector<2x16xf32>
    %c0_9 = arith.constant 0 : index
    %c0_10 = arith.constant 0 : index
    %20 = vector.load %arg3[%c0_9, %c0_10] : memref<2x16xf32, #tpu.memory_space<vmem>>, vector<2x16xf32>
    tpu.vector_store %arg3[%c0_9, %c0_10], %19 {strides = array<i32>} : memref<2x16xf32, #tpu.memory_space<vmem>>, vector<2x16xf32>,
    return
  }
}

</mosaic_0001>

<llo_original>
// kernel: model_nlm_forward.4
$region0: #{model_nlm_forward.4}
  #allocation0 [shape = 'u32[]', space=smem, size = 0x4, offset = 0x4, fixed_abs, tag = 'smem constant byte address 0x4 - core index']
  #allocation1 [shape = 'u32[72,128]{1,0:T(1,128)}', space=vmem, size = 0x9000, scoped, tag = 'internal scratch']
  %s0 = inlined_call_operand.vmem [shape: f32[36,16], index: 0, kind: input, shape index: {}]
  %s1 = inlined_call_operand.vmem [shape: f32[8,36], index: 1, kind: input, shape index: {}]
  %s2 = inlined_call_operand.vmem [shape: f32[8,1], index: 2, kind: input, shape index: {}]
  %s3 = inlined_call_operand.vmem [shape: f32[36,128], index: 3, kind: input, shape index: {}]
  %s4 = inlined_call_operand.vmem [shape: f32[8,36], index: 4, kind: input, shape index: {}]
  %s5 = inlined_call_operand.vmem [shape: f32[8,1], index: 5, kind: input, shape index: {}]
  %s6 = inlined_call_operand.vmem [shape: f32[108,1024], index: 6, kind: input, shape index: {}]
  %s7 = inlined_call_operand.vmem [shape: f32[8,108], index: 7, kind: input, shape index: {}]
  %s8 = inlined_call_operand.vmem [shape: f32[8,1], index: 8, kind: input, shape index: {}]
  %s9 = inlined_call_operand.vmem [shape: f32[8,16], index: 9, kind: output, shape index: {0}]
  %s10 = inlined_call_operand.vmem [shape: f32[8,128], index: 10, kind: output, shape index: {1}]
  %s11 = inlined_call_operand.vmem [shape: f32[8,1024], index: 11, kind: output, shape index: {2}]
  %12 = xla_tuple %s9, %s10, %s11
  %s13 = sld [smem:[#allocation0]]
  $region62: #{model_nlm_forward.4} parent=0
    _
  %s15 = ssub.s32 1, %s13
  %s16 = scalar_select 0, %s15, %s13
  // Predicated region
  $region2: #{model_nlm_forward.4} parent=0 // pred_check
    _
  $region3: #{model_nlm_forward.4} parent=0 // pred_check_branch
    %18 = sbr.rel (0) target = $region5
  $region4: #{model_nlm_forward.4} parent=0 // pred_region
    _
  $region5: #{model_nlm_forward.4} parent=0 // pred_fallthru
    _
  // Predicated region
  $region6: #{model_nlm_forward.4} parent=0 // pred_check
    _
  $region7: #{model_nlm_forward.4} parent=0 // pred_check_branch
    %20 = sbr.rel (0) target = $region9
  $region8: #{model_nlm_forward.4} parent=0 // pred_region
    _
  $region9: #{model_nlm_forward.4} parent=0 // pred_fallthru
    _
  // Predicated region
  $region10: #{model_nlm_forward.4} parent=0 // pred_check
    _
  $region11: #{model_nlm_forward.4} parent=0 // pred_check_branch
    %22 = sbr.rel (0) target = $region13
  $region12: #{model_nlm_forward.4} parent=0 // pred_region
    _
  $region13: #{model_nlm_forward.4} parent=0 // pred_fallthru
    _
  // Predicated region
  $region14: #{model_nlm_forward.4} parent=0 // pred_check
    _
  $region15: #{model_nlm_forward.4} parent=0 // pred_check_branch
    %24 = sbr.rel (0) target = $region17
  $region16: #{model_nlm_forward.4} parent=0 // pred_region
    _
  $region17: #{model_nlm_forward.4} parent=0 // pred_fallthru
    _
  // Predicated region
  $region18: #{model_nlm_forward.4} parent=0 // pred_check
    _
  $region19: #{model_nlm_forward.4} parent=0 // pred_check_branch
    %26 = sbr.rel (0) target = $region21
  $region20: #{model_nlm_forward.4} parent=0 // pred_region
    _
  $region21: #{model_nlm_forward.4} parent=0 // pred_fallthru
    _
  // Predicated region
  $region22: #{model_nlm_forward.4} parent=0 // pred_check
    _
  $region23: #{model_nlm_forward.4} parent=0 // pred_check_branch
    %28 = sbr.rel (0) target = $region25
  $region24: #{model_nlm_forward.4} parent=0 // pred_region
    _
  $region25: #{model_nlm_forward.4} parent=0 // pred_fallthru
    _
  // Predicated region
  $region26: #{model_nlm_forward.4} parent=0 // pred_check
    _
  $region27: #{model_nlm_forward.4} parent=0 // pred_check_branch
    %30 = sbr.rel (0) target = $region29
  $region28: #{model_nlm_forward.4} parent=0 // pred_region
    _
  $region29: #{model_nlm_forward.4} parent=0 // pred_fallthru
    _
  // Predicated region
  $region30: #{model_nlm_forward.4} parent=0 // pred_check
    _
  $region31: #{model_nlm_forward.4} parent=0 // pred_check_branch
    %32 = sbr.rel (0) target = $region33
  $region32: #{model_nlm_forward.4} parent=0 // pred_region
    _
  $region33: #{model_nlm_forward.4} parent=0 // pred_fallthru
    _
  // Predicated region
  $region34: #{model_nlm_forward.4} parent=0 // pred_check
    _
  $region35: #{model_nlm_forward.4} parent=0 // pred_check_branch
    %34 = sbr.rel (0) target = $region37
  $region36: #{model_nlm_forward.4} parent=0 // pred_region
    _
  $region37: #{model_nlm_forward.4} parent=0 // pred_fallthru
    _
  %v35 = vld [vmem:[%s0] sm:$0xff]
  %v36 = vld [vmem:[%s0 + $0x8] sm:$0xff]
  %v37 = vld [vmem:[%s0 + $0x10] sm:$0xff]
  %v38 = vld [vmem:[%s0 + $0x18] sm:$0xff]
  %v39 = vld [vmem:[%s0 + $0x20] sm:$0xf]
  %v40 = vld [vmem:[%s1] sm:$0xff]
  %v41 = vld [vmem:[%s2] sm:$0xff]
  %43 = vset.pattern.permute.xlu0 0
  %44 = vperm.xlu0 %43, %v41
  %v45 = vpop.permute.xlu0 %44
  %vm47 = vcmask 293888
  %v49 = vsel %vm47, %v40, 0
  %vm51 = vcmask 1043456
  %v53 = vsel %vm51, %v39, 0
  %55 = vmatpush.msra.mxu0 0.0
  %56 = vmatpush.msra.mxu0 0.0
  %57 = vmatpush.msra.mxu0 0.0
  %58 = vmatpush.msra.mxu0 0.0
  %59 = vmatpush.msra.mxu0 0.0
  %60 = vmatpush.msra.mxu0 0.0
  %61 = vmatpush.msra.mxu0 0.0
  %62 = vmatpush.msra.mxu0 0.0
  %63 = vmatpush.msra.mxu0 0.0
  %64 = vmatpush.msra.mxu0 0.0
  %65 = vmatpush.msra.mxu0 0.0
  %66 = vmatpush.msra.mxu0 %v53
  %67 = vmatpush.msra.mxu0 %v38
  %68 = vmatpush.msra.mxu0 %v37
  %69 = vmatpush.msra.mxu0 %v36
  %70 = vmatpush.msra.mxu0 %v35
  %71 = vmatmul.f32.gmra.mxu0 %v49
  %v72 = vpop.f32.mrf.mxu0
  %v73 = vadd.f32 %v45, %v72
  %74 = vdwg.mxu0
  %v75 = vxor.u32 %v73, 2147483648
  %v76 = vmul.f32 %v75, 1.442695
  %v77 = vpow.pop %v76
  %v78 = vadd.f32 %v77, 1.0
  %v79 = vrcp.pop %v78
  %v80 = vmul.f32 %v78, %v79
  %v81 = vsub.f32 1.0, %v80
  %v82 = vmul.f32 %v79, %v81
  %v83 = vadd.f32 %v79, %v82
  %vm84 = vweird.f32 %v78
  %vm85 = vweird.f32 %v79
  %vm86 = vmor %vm84, %vm85
  %v87 = vsel %vm86, %v79, %v83
  %v88 = vand.u32 2147483647, %v78
  %vm89 = vcmp.eq.f32.partialorder %v88, 8.507059e+37
  %v90 = vand.u32 %v78, 2147483648
  %v91 = vor.u32 1.1754944e-38, %v90
  %v92 = vsel %vm89, %v91, %v87
  %v93 = vmul.f32 1.0, %v92
  %vm94 = vcmask 130048
  %95 = vst.msk [vmem:[%s9] sm:$0xff] %vm94, %v93
  %v96 = vld [vmem:[%s3] sm:$0xff]
  %v97 = vld [vmem:[%s3 + $0x8] sm:$0xff]
  %v98 = vld [vmem:[%s3 + $0x10] sm:$0xff]
  %v99 = vld [vmem:[%s3 + $0x18] sm:$0xff]
  %v100 = vld [vmem:[%s3 + $0x20] sm:$0xf]
  %v101 = vld [vmem:[%s4] sm:$0xff]
  %v102 = vld [vmem:[%s5] sm:$0xff]
  %104 = vset.pattern.permute.xlu0 0
  %105 = vperm.xlu0 %104, %v102
  %v106 = vpop.permute.xlu0 %105
  %v109 = vsel %vm47, %v101, 0
  %v112 = vsel %vm51, %v100, 0
  %114 = vmatpush.msra.mxu0 0.0
  %115 = vmatpush.msra.mxu0 0.0
  %116 = vmatpush.msra.mxu0 0.0
  %117 = vmatpush.msra.mxu0 0.0
  %118 = vmatpush.msra.mxu0 0.0
  %119 = vmatpush.msra.mxu0 0.0
  %120 = vmatpush.msra.mxu0 0.0
  %121 = vmatpush.msra.mxu0 0.0
  %122 = vmatpush.msra.mxu0 0.0
  %123 = vmatpush.msra.mxu0 0.0
  %124 = vmatpush.msra.mxu0 0.0
  %125 = vmatpush.msra.mxu0 %v112
  %126 = vmatpush.msra.mxu0 %v99
  %127 = vmatpush.msra.mxu0 %v98
  %128 = vmatpush.msra.mxu0 %v97
  %129 = vmatpush.msra.mxu0 %v96
  %130 = vmatmul.f32.gmra.mxu0 %v109
  %v131 = vpop.f32.mrf.mxu0
  %v132 = vadd.f32 %v106, %v131
  %133 = vdwg.mxu0
  %v134 = vxor.u32 %v132, 2147483648
  %v135 = vmul.f32 %v134, 1.442695
  %v136 = vpow.pop %v135
  %v137 = vadd.f32 %v136, 1.0
  %v138 = vrcp.pop %v137
  %v139 = vmul.f32 %v137, %v138
  %v140 = vsub.f32 1.0, %v139
  %v141 = vmul.f32 %v138, %v140
  %v142 = vadd.f32 %v138, %v141
  %vm143 = vweird.f32 %v137
  %vm144 = vweird.f32 %v138
  %vm145 = vmor %vm143, %vm144
  %v146 = vsel %vm145, %v138, %v142
  %v147 = vand.u32 2147483647, %v137
  %vm148 = vcmp.eq.f32.partialorder %v147, 8.507059e+37
  %v149 = vand.u32 %v137, 2147483648
  %v150 = vor.u32 1.1754944e-38, %v149
  %v151 = vsel %vm148, %v150, %v146
  %v152 = vmul.f32 1.0, %v151
  %153 = vst [vmem:[%s10] sm:$0xff] %v152
  %v154 = vld [vmem:[%s6] sm:$0xff]
  %v155 = vld [vmem:[%s6 + $0x8] sm:$0xff]
  %v156 = vld [vmem:[%s6 + $0x10] sm:$0xff]
  %v157 = vld [vmem:[%s6 + $0x18] sm:$0xff]
  %v158 = vld [vmem:[%s6 + $0x20] sm:$0xff]
  %v159 = vld [vmem:[%s6 + $0x28] sm:$0xff]
  %v160 = vld [vmem:[%s6 + $0x30] sm:$0xff]
  %v161 = vld [vmem:[%s6 + $0x38] sm:$0xff]
  %v162 = vld [vmem:[%s6 + $0x40] sm:$0xff]
  %v163 = vld [vmem:[%s6 + $0x48] sm:$0xff]
  %v164 = vld [vmem:[%s6 + $0x50] sm:$0xff]
  %v165 = vld [vmem:[%s6 + $0x58] sm:$0xff]
  %v166 = vld [vmem:[%s6 + $0x60] sm:$0xff]
  %v167 = vld [vmem:[%s6 + $0x68] sm:$0xff]
  %v168 = vld [vmem:[%s6 + $0x70] sm:$0xff]
  %v169 = vld [vmem:[%s6 + $0x78] sm:$0xff]
  %v170 = vld [vmem:[%s6 + $0x80] sm:$0xff]
  %v171 = vld [vmem:[%s6 + $0x88] sm:$0xff]
  %v172 = vld [vmem:[%s6 + $0x90] sm:$0xff]
  %v173 = vld [vmem:[%s6 + $0x98] sm:$0xff]
  %v174 = vld [vmem:[%s6 + $0xa0] sm:$0xff]
  %v175 = vld [vmem:[%s6 + $0xa8] sm:$0xff]
  %v176 = vld [vmem:[%s6 + $0xb0] sm:$0xff]
  %v177 = vld [vmem:[%s6 + $0xb8] sm:$0xff]
  %v178 = vld [vmem:[%s6 + $0xc0] sm:$0xff]
  %v179 = vld [vmem:[%s6 + $0xc8] sm:$0xff]
  %v180 = vld [vmem:[%s6 + $0xd0] sm:$0xff]
  %v181 = vld [vmem:[%s6 + $0xd8] sm:$0xff]
  %v182 = vld [vmem:[%s6 + $0xe0] sm:$0xff]
  %v183 = vld [vmem:[%s6 + $0xe8] sm:$0xff]
  %v184 = vld [vmem:[%s6 + $0xf0] sm:$0xff]
  %v185 = vld [vmem:[%s6 + $0xf8] sm:$0xff]
  %v186 = vld [vmem:[%s6 + $0x100] sm:$0xff]
  %v187 = vld [vmem:[%s6 + $0x108] sm:$0xff]
  %v188 = vld [vmem:[%s6 + $0x110] sm:$0xff]
  %v189 = vld [vmem:[%s6 + $0x118] sm:$0xff]
  %v190 = vld [vmem:[%s6 + $0x120] sm:$0xff]
  %v191 = vld [vmem:[%s6 + $0x128] sm:$0xff]
  %v192 = vld [vmem:[%s6 + $0x130] sm:$0xff]
  %v193 = vld [vmem:[%s6 + $0x138] sm:$0xff]
  %v194 = vld [vmem:[%s6 + $0x140] sm:$0xff]
  %v195 = vld [vmem:[%s6 + $0x148] sm:$0xff]
  %v196 = vld [vmem:[%s6 + $0x150] sm:$0xff]
  %v197 = vld [vmem:[%s6 + $0x158] sm:$0xff]
  %v198 = vld [vmem:[%s6 + $0x160] sm:$0xff]
  %v199 = vld [vmem:[%s6 + $0x168] sm:$0xff]
  %v200 = vld [vmem:[%s6 + $0x170] sm:$0xff]
  %v201 = vld [vmem:[%s6 + $0x178] sm:$0xff]
  %v202 = vld [vmem:[%s6 + $0x180] sm:$0xff]
  %v203 = vld [vmem:[%s6 + $0x188] sm:$0xff]
  %v204 = vld [vmem:[%s6 + $0x190] sm:$0xff]
  %v205 = vld [vmem:[%s6 + $0x198] sm:$0xff]
  %v206 = vld [vmem:[%s6 + $0x1a0] sm:$0xff]
  %v207 = vld [vmem:[%s6 + $0x1a8] sm:$0xff]
  %v208 = vld [vmem:[%s6 + $0x1b0] sm:$0xff]
  %v209 = vld [vmem:[%s6 + $0x1b8] sm:$0xff]
  %v210 = vld [vmem:[%s6 + $0x1c0] sm:$0xff]
  %v211 = vld [vmem:[%s6 + $0x1c8] sm:$0xff]
  %v212 = vld [vmem:[%s6 + $0x1d0] sm:$0xff]
  %v213 = vld [vmem:[%s6 + $0x1d8] sm:$0xff]
  %v214 = vld [vmem:[%s6 + $0x1e0] sm:$0xff]
  %v215 = vld [vmem:[%s6 + $0x1e8] sm:$0xff]
  %v216 = vld [vmem:[%s6 + $0x1f0] sm:$0xff]
  %v217 = vld [vmem:[%s6 + $0x1f8] sm:$0xff]
  %v218 = vld [vmem:[%s6 + $0x200] sm:$0xff]
  %v219 = vld [vmem:[%s6 + $0x208] sm:$0xff]
  %v220 = vld [vmem:[%s6 + $0x210] sm:$0xff]
  %v221 = vld [vmem:[%s6 + $0x218] sm:$0xff]
  %v222 = vld [vmem:[%s6 + $0x220] sm:$0xff]
  %v223 = vld [vmem:[%s6 + $0x228] sm:$0xff]
  %v224 = vld [vmem:[%s6 + $0x230] sm:$0xff]
  %v225 = vld [vmem:[%s6 + $0x238] sm:$0xff]
  %v226 = vld [vmem:[%s6 + $0x240] sm:$0xff]
  %v227 = vld [vmem:[%s6 + $0x248] sm:$0xff]
  %v228 = vld [vmem:[%s6 + $0x250] sm:$0xff]
  %v229 = vld [vmem:[%s6 + $0x258] sm:$0xff]
  %v230 = vld [vmem:[%s6 + $0x260] sm:$0xff]
  %v231 = vld [vmem:[%s6 + $0x268] sm:$0xff]
  %v232 = vld [vmem:[%s6 + $0x270] sm:$0xff]
  %v233 = vld [vmem:[%s6 + $0x278] sm:$0xff]
  %v234 = vld [vmem:[%s6 + $0x280] sm:$0xff]
  %v235 = vld [vmem:[%s6 + $0x288] sm:$0xff]
  %v236 = vld [vmem:[%s6 + $0x290] sm:$0xff]
  %v237 = vld [vmem:[%s6 + $0x298] sm:$0xff]
  %v238 = vld [vmem:[%s6 + $0x2a0] sm:$0xff]
  %v239 = vld [vmem:[%s6 + $0x2a8] sm:$0xff]
  %v240 = vld [vmem:[%s6 + $0x2b0] sm:$0xff]
  %v241 = vld [vmem:[%s6 + $0x2b8] sm:$0xff]
  %v242 = vld [vmem:[%s6 + $0x2c0] sm:$0xff]
  %v243 = vld [vmem:[%s6 + $0x2c8] sm:$0xff]
  %v244 = vld [vmem:[%s6 + $0x2d0] sm:$0xff]
  %v245 = vld [vmem:[%s6 + $0x2d8] sm:$0xff]
  %v246 = vld [vmem:[%s6 + $0x2e0] sm:$0xff]
  %v247 = vld [vmem:[%s6 + $0x2e8] sm:$0xff]
  %v248 = vld [vmem:[%s6 + $0x2f0] sm:$0xff]
  %v249 = vld [vmem:[%s6 + $0x2f8] sm:$0xff]
  %v250 = vld [vmem:[%s6 + $0x300] sm:$0xff]
  %v251 = vld [vmem:[%s6 + $0x308] sm:$0xff]
  %v252 = vld [vmem:[%s6 + $0x310] sm:$0xff]
  %v253 = vld [vmem:[%s6 + $0x318] sm:$0xff]
  %v254 = vld [vmem:[%s6 + $0x320] sm:$0xff]
  %v255 = vld [vmem:[%s6 + $0x328] sm:$0xff]
  %v256 = vld [vmem:[%s6 + $0x330] sm:$0xff]
  %v257 = vld [vmem:[%s6 + $0x338] sm:$0xff]
  %v258 = vld [vmem:[%s6 + $0x340] sm:$0xf]
  %v259 = vld [vmem:[%s6 + $0x348] sm:$0xf]
  %v260 = vld [vmem:[%s6 + $0x350] sm:$0xf]
  %v261 = vld [vmem:[%s6 + $0x358] sm:$0xf]
  %v262 = vld [vmem:[%s6 + $0x360] sm:$0xf]
  %v263 = vld [vmem:[%s6 + $0x368] sm:$0xf]
  %v264 = vld [vmem:[%s6 + $0x370] sm:$0xf]
  %v265 = vld [vmem:[%s6 + $0x378] sm:$0xf]
  %v266 = vld [vmem:[%s7] sm:$0xff]
  %v267 = vld [vmem:[%s8] sm:$0xff]
  %269 = vset.pattern.permute.xlu0 0
  %270 = vperm.xlu0 %269, %v267
  %v271 = vpop.permute.xlu0 %270
  %vm273 = vcmask 883712
  %v275 = vsel %vm273, %v266, 0
  %v278 = vsel %vm51, %v258, 0
  %v281 = vsel %vm51, %v259, 0
  %v284 = vsel %vm51, %v260, 0
  %v287 = vsel %vm51, %v261, 0
  %v290 = vsel %vm51, %v262, 0
  %v293 = vsel %vm51, %v263, 0
  %v296 = vsel %vm51, %v264, 0
  %v299 = vsel %vm51, %v265, 0
  %301 = vmatpush.msra.mxu0 0.0
  %302 = vmatpush.msra.mxu0 0.0
  %303 = vmatpush.msra.mxu0 %v278
  %304 = vmatpush.msra.mxu0 %v250
  %305 = vmatpush.msra.mxu0 %v242
  %306 = vmatpush.msra.mxu0 %v234
  %307 = vmatpush.msra.mxu0 %v226
  %308 = vmatpush.msra.mxu0 %v218
  %309 = vmatpush.msra.mxu0 %v210
  %310 = vmatpush.msra.mxu0 %v202
  %311 = vmatpush.msra.mxu0 %v194
  %312 = vmatpush.msra.mxu0 %v186
  %313 = vmatpush.msra.mxu0 %v178
  %314 = vmatpush.msra.mxu0 %v170
  %315 = vmatpush.msra.mxu0 %v162
  %316 = vmatpush.msra.mxu0 %v154
  %317 = vmatmul.f32.gmra.mxu0 %v275
  %v318 = vpop.f32.mrf.mxu0
  %v319 = vadd.f32 %v271, %v318
  %320 = vdwg.mxu0
  %321 = vmatpush.msra.mxu0 0.0
  %322 = vmatpush.msra.mxu0 0.0
  %323 = vmatpush.msra.mxu0 %v281
  %324 = vmatpush.msra.mxu0 %v251
  %325 = vmatpush.msra.mxu0 %v243
  %326 = vmatpush.msra.mxu0 %v235
  %327 = vmatpush.msra.mxu0 %v227
  %328 = vmatpush.msra.mxu0 %v219
  %329 = vmatpush.msra.mxu0 %v211
  %330 = vmatpush.msra.mxu0 %v203
  %331 = vmatpush.msra.mxu0 %v195
  %332 = vmatpush.msra.mxu0 %v187
  %333 = vmatpush.msra.mxu0 %v179
  %334 = vmatpush.msra.mxu0 %v171
  %335 = vmatpush.msra.mxu0 %v163
  %336 = vmatpush.msra.mxu0 %v155
  %337 = vmatmul.f32.gmra.mxu0 %v275
  %v338 = vpop.f32.mrf.mxu0
  %v339 = vadd.f32 %v271, %v338
  %340 = vdwg.mxu0
  %341 = vmatpush.msra.mxu0 0.0
  %342 = vmatpush.msra.mxu0 0.0
  %343 = vmatpush.msra.mxu0 %v284
  %344 = vmatpush.msra.mxu0 %v252
  %345 = vmatpush.msra.mxu0 %v244
  %346 = vmatpush.msra.mxu0 %v236
  %347 = vmatpush.msra.mxu0 %v228
  %348 = vmatpush.msra.mxu0 %v220
  %349 = vmatpush.msra.mxu0 %v212
  %350 = vmatpush.msra.mxu0 %v204
  %351 = vmatpush.msra.mxu0 %v196
  %352 = vmatpush.msra.mxu0 %v188
  %353 = vmatpush.msra.mxu0 %v180
  %354 = vmatpush.msra.mxu0 %v172
  %355 = vmatpush.msra.mxu0 %v164
  %356 = vmatpush.msra.mxu0 %v156
  %357 = vmatmul.f32.gmra.mxu0 %v275
  %v358 = vpop.f32.mrf.mxu0
  %v359 = vadd.f32 %v271, %v358
  %360 = vdwg.mxu0
  %361 = vmatpush.msra.mxu0 0.0
  %362 = vmatpush.msra.mxu0 0.0
  %363 = vmatpush.msra.mxu0 %v287
  %364 = vmatpush.msra.mxu0 %v253
  %365 = vmatpush.msra.mxu0 %v245
  %366 = vmatpush.msra.mxu0 %v237
  %367 = vmatpush.msra.mxu0 %v229
  %368 = vmatpush.msra.mxu0 %v221
  %369 = vmatpush.msra.mxu0 %v213
  %370 = vmatpush.msra.mxu0 %v205
  %371 = vmatpush.msra.mxu0 %v197
  %372 = vmatpush.msra.mxu0 %v189
  %373 = vmatpush.msra.mxu0 %v181
  %374 = vmatpush.msra.mxu0 %v173
  %375 = vmatpush.msra.mxu0 %v165
  %376 = vmatpush.msra.mxu0 %v157
  %377 = vmatmul.f32.gmra.mxu0 %v275
  %v378 = vpop.f32.mrf.mxu0
  %v379 = vadd.f32 %v271, %v378
  %380 = vdwg.mxu0
  %381 = vmatpush.msra.mxu0 0.0
  %382 = vmatpush.msra.mxu0 0.0
  %383 = vmatpush.msra.mxu0 %v290
  %384 = vmatpush.msra.mxu0 %v254
  %385 = vmatpush.msra.mxu0 %v246
  %386 = vmatpush.msra.mxu0 %v238
  %387 = vmatpush.msra.mxu0 %v230
  %388 = vmatpush.msra.mxu0 %v222
  %389 = vmatpush.msra.mxu0 %v214
  %390 = vmatpush.msra.mxu0 %v206
  %391 = vmatpush.msra.mxu0 %v198
  %392 = vmatpush.msra.mxu0 %v190
  %393 = vmatpush.msra.mxu0 %v182
  %394 = vmatpush.msra.mxu0 %v174
  %395 = vmatpush.msra.mxu0 %v166
  %396 = vmatpush.msra.mxu0 %v158
  %397 = vmatmul.f32.gmra.mxu0 %v275
  %v398 = vpop.f32.mrf.mxu0
  %v399 = vadd.f32 %v271, %v398
  %400 = vdwg.mxu0
  %401 = vmatpush.msra.mxu0 0.0
  %402 = vmatpush.msra.mxu0 0.0
  %403 = vmatpush.msra.mxu0 %v293
  %404 = vmatpush.msra.mxu0 %v255
  %405 = vmatpush.msra.mxu0 %v247
  %406 = vmatpush.msra.mxu0 %v239
  %407 = vmatpush.msra.mxu0 %v231
  %408 = vmatpush.msra.mxu0 %v223
  %409 = vmatpush.msra.mxu0 %v215
  %410 = vmatpush.msra.mxu0 %v207
  %411 = vmatpush.msra.mxu0 %v199
  %412 = vmatpush.msra.mxu0 %v191
  %413 = vmatpush.msra.mxu0 %v183
  %414 = vmatpush.msra.mxu0 %v175
  %415 = vmatpush.msra.mxu0 %v167
  %416 = vmatpush.msra.mxu0 %v159
  %417 = vmatmul.f32.gmra.mxu0 %v275
  %v418 = vpop.f32.mrf.mxu0
  %v419 = vadd.f32 %v271, %v418
  %420 = vdwg.mxu0
  %421 = vmatpush.msra.mxu0 0.0
  %422 = vmatpush.msra.mxu0 0.0
  %423 = vmatpush.msra.mxu0 %v296
  %424 = vmatpush.msra.mxu0 %v256
  %425 = vmatpush.msra.mxu0 %v248
  %426 = vmatpush.msra.mxu0 %v240
  %427 = vmatpush.msra.mxu0 %v232
  %428 = vmatpush.msra.mxu0 %v224
  %429 = vmatpush.msra.mxu0 %v216
  %430 = vmatpush.msra.mxu0 %v208
  %431 = vmatpush.msra.mxu0 %v200
  %432 = vmatpush.msra.mxu0 %v192
  %433 = vmatpush.msra.mxu0 %v184
  %434 = vmatpush.msra.mxu0 %v176
  %435 = vmatpush.msra.mxu0 %v168
  %436 = vmatpush.msra.mxu0 %v160
  %437 = vmatmul.f32.gmra.mxu0 %v275
  %v438 = vpop.f32.mrf.mxu0
  %v439 = vadd.f32 %v271, %v438
  %440 = vdwg.mxu0
  %441 = vmatpush.msra.mxu0 0.0
  %442 = vmatpush.msra.mxu0 0.0
  %443 = vmatpush.msra.mxu0 %v299
  %444 = vmatpush.msra.mxu0 %v257
  %445 = vmatpush.msra.mxu0 %v249
  %446 = vmatpush.msra.mxu0 %v241
  %447 = vmatpush.msra.mxu0 %v233
  %448 = vmatpush.msra.mxu0 %v225
  %449 = vmatpush.msra.mxu0 %v217
  %450 = vmatpush.msra.mxu0 %v209
  %451 = vmatpush.msra.mxu0 %v201
  %452 = vmatpush.msra.mxu0 %v193
  %453 = vmatpush.msra.mxu0 %v185
  %454 = vmatpush.msra.mxu0 %v177
  %455 = vmatpush.msra.mxu0 %v169
  %456 = vmatpush.msra.mxu0 %v161
  %457 = vmatmul.f32.gmra.mxu0 %v275
  %v458 = vpop.f32.mrf.mxu0
  %v459 = vadd.f32 %v271, %v458
  %460 = vdwg.mxu0
  %v461 = vxor.u32 %v319, 2147483648
  %v462 = vxor.u32 %v339, 2147483648
  %v463 = vxor.u32 %v359, 2147483648
  %v464 = vxor.u32 %v379, 2147483648
  %v465 = vxor.u32 %v399, 2147483648
  %v466 = vxor.u32 %v419, 2147483648
  %v467 = vxor.u32 %v439, 2147483648
  %v468 = vxor.u32 %v459, 2147483648
  %v469 = vmul.f32 %v461, 1.442695
  %v470 = vpow.pop %v469
  %v471 = vmul.f32 %v462, 1.442695
  %v472 = vpow.pop %v471
  %v473 = vmul.f32 %v463, 1.442695
  %v474 = vpow.pop %v473
  %v475 = vmul.f32 %v464, 1.442695
  %v476 = vpow.pop %v475
  %v477 = vmul.f32 %v465, 1.442695
  %v478 = vpow.pop %v477
  %v479 = vmul.f32 %v466, 1.442695
  %v480 = vpow.pop %v479
  %v481 = vmul.f32 %v467, 1.442695
  %v482 = vpow.pop %v481
  %v483 = vmul.f32 %v468, 1.442695
  %v484 = vpow.pop %v483
  %v485 = vadd.f32 %v470, 1.0
  %v486 = vadd.f32 %v472, 1.0
  %v487 = vadd.f32 %v474, 1.0
  %v488 = vadd.f32 %v476, 1.0
  %v489 = vadd.f32 %v478, 1.0
  %v490 = vadd.f32 %v480, 1.0
  %v491 = vadd.f32 %v482, 1.0
  %v492 = vadd.f32 %v484, 1.0
  %v493 = vrcp.pop %v485
  %v494 = vmul.f32 %v485, %v493
  %v495 = vsub.f32 1.0, %v494
  %v496 = vmul.f32 %v493, %v495
  %v497 = vadd.f32 %v493, %v496
  %vm498 = vweird.f32 %v485
  %vm499 = vweird.f32 %v493
  %vm500 = vmor %vm498, %vm499
  %v501 = vsel %vm500, %v493, %v497
  %v502 = vand.u32 2147483647, %v485
  %vm503 = vcmp.eq.f32.partialorder %v502, 8.507059e+37
  %v504 = vand.u32 %v485, 2147483648
  %v505 = vor.u32 1.1754944e-38, %v504
  %v506 = vsel %vm503, %v505, %v501
  %v507 = vmul.f32 1.0, %v506
  %v508 = vrcp.pop %v486
  %v509 = vmul.f32 %v486, %v508
  %v510 = vsub.f32 1.0, %v509
  %v511 = vmul.f32 %v508, %v510
  %v512 = vadd.f32 %v508, %v511
  %vm513 = vweird.f32 %v486
  %vm514 = vweird.f32 %v508
  %vm515 = vmor %vm513, %vm514
  %v516 = vsel %vm515, %v508, %v512
  %v517 = vand.u32 2147483647, %v486
  %vm518 = vcmp.eq.f32.partialorder %v517, 8.507059e+37
  %v519 = vand.u32 %v486, 2147483648
  %v520 = vor.u32 1.1754944e-38, %v519
  %v521 = vsel %vm518, %v520, %v516
  %v522 = vmul.f32 1.0, %v521
  %v523 = vrcp.pop %v487
  %v524 = vmul.f32 %v487, %v523
  %v525 = vsub.f32 1.0, %v524
  %v526 = vmul.f32 %v523, %v525
  %v527 = vadd.f32 %v523, %v526
  %vm528 = vweird.f32 %v487
  %vm529 = vweird.f32 %v523
  %vm530 = vmor %vm528, %vm529
  %v531 = vsel %vm530, %v523, %v527
  %v532 = vand.u32 2147483647, %v487
  %vm533 = vcmp.eq.f32.partialorder %v532, 8.507059e+37
  %v534 = vand.u32 %v487, 2147483648
  %v535 = vor.u32 1.1754944e-38, %v534
  %v536 = vsel %vm533, %v535, %v531
  %v537 = vmul.f32 1.0, %v536
  %v538 = vrcp.pop %v488
  %v539 = vmul.f32 %v488, %v538
  %v540 = vsub.f32 1.0, %v539
  %v541 = vmul.f32 %v538, %v540
  %v542 = vadd.f32 %v538, %v541
  %vm543 = vweird.f32 %v488
  %vm544 = vweird.f32 %v538
  %vm545 = vmor %vm543, %vm544
  %v546 = vsel %vm545, %v538, %v542
  %v547 = vand.u32 2147483647, %v488
  %vm548 = vcmp.eq.f32.partialorder %v547, 8.507059e+37
  %v549 = vand.u32 %v488, 2147483648
  %v550 = vor.u32 1.1754944e-38, %v549
  %v551 = vsel %vm548, %v550, %v546
  %v552 = vmul.f32 1.0, %v551
  %v553 = vrcp.pop %v489
  %v554 = vmul.f32 %v489, %v553
  %v555 = vsub.f32 1.0, %v554
  %v556 = vmul.f32 %v553, %v555
  %v557 = vadd.f32 %v553, %v556
  %vm558 = vweird.f32 %v489
  %vm559 = vweird.f32 %v553
  %vm560 = vmor %vm558, %vm559
  %v561 = vsel %vm560, %v553, %v557
  %v562 = vand.u32 2147483647, %v489
  %vm563 = vcmp.eq.f32.partialorder %v562, 8.507059e+37
  %v564 = vand.u32 %v489, 2147483648
  %v565 = vor.u32 1.1754944e-38, %v564
  %v566 = vsel %vm563, %v565, %v561
  %v567 = vmul.f32 1.0, %v566
  %v568 = vrcp.pop %v490
  %v569 = vmul.f32 %v490, %v568
  %v570 = vsub.f32 1.0, %v569
  %v571 = vmul.f32 %v568, %v570
  %v572 = vadd.f32 %v568, %v571
  %vm573 = vweird.f32 %v490
  %vm574 = vweird.f32 %v568
  %vm575 = vmor %vm573, %vm574
  %v576 = vsel %vm575, %v568, %v572
  %v577 = vand.u32 2147483647, %v490
  %vm578 = vcmp.eq.f32.partialorder %v577, 8.507059e+37
  %v579 = vand.u32 %v490, 2147483648
  %v580 = vor.u32 1.1754944e-38, %v579
  %v581 = vsel %vm578, %v580, %v576
  %v582 = vmul.f32 1.0, %v581
  %v583 = vrcp.pop %v491
  %v584 = vmul.f32 %v491, %v583
  %v585 = vsub.f32 1.0, %v584
  %v586 = vmul.f32 %v583, %v585
  %v587 = vadd.f32 %v583, %v586
  %vm588 = vweird.f32 %v491
  %vm589 = vweird.f32 %v583
  %vm590 = vmor %vm588, %vm589
  %v591 = vsel %vm590, %v583, %v587
  %v592 = vand.u32 2147483647, %v491
  %vm593 = vcmp.eq.f32.partialorder %v592, 8.507059e+37
  %v594 = vand.u32 %v491, 2147483648
  %v595 = vor.u32 1.1754944e-38, %v594
  %v596 = vsel %vm593, %v595, %v591
  %v597 = vmul.f32 1.0, %v596
  %v598 = vrcp.pop %v492
  %v599 = vmul.f32 %v492, %v598
  %v600 = vsub.f32 1.0, %v599
  %v601 = vmul.f32 %v598, %v600
  %v602 = vadd.f32 %v598, %v601
  %vm603 = vweird.f32 %v492
  %vm604 = vweird.f32 %v598
  %vm605 = vmor %vm603, %vm604
  %v606 = vsel %vm605, %v598, %v602
  %v607 = vand.u32 2147483647, %v492
  %vm608 = vcmp.eq.f32.partialorder %v607, 8.507059e+37
  %v609 = vand.u32 %v492, 2147483648
  %v610 = vor.u32 1.1754944e-38, %v609
  %v611 = vsel %vm608, %v610, %v606
  %v612 = vmul.f32 1.0, %v611
  %613 = vst [vmem:[%s11] sm:$0xff] %v507
  %614 = vst [vmem:[%s11 + $0x8] sm:$0xff] %v522
  %615 = vst [vmem:[%s11 + $0x10] sm:$0xff] %v537
  %616 = vst [vmem:[%s11 + $0x18] sm:$0xff] %v552
  %617 = vst [vmem:[%s11 + $0x20] sm:$0xff] %v567
  %618 = vst [vmem:[%s11 + $0x28] sm:$0xff] %v582
  %619 = vst [vmem:[%s11 + $0x30] sm:$0xff] %v597
  %620 = vst [vmem:[%s11 + $0x38] sm:$0xff] %v612
  // Predicated region
  $region38: #{model_nlm_forward.4} parent=0 // pred_check
    _
  $region39: #{model_nlm_forward.4} parent=0 // pred_check_branch
    %622 = sbr.rel (0) target = $region41
  $region40: #{model_nlm_forward.4} parent=0 // pred_region
    _
  $region41: #{model_nlm_forward.4} parent=0 // pred_fallthru
    _
  // Predicated region
  $region42: #{model_nlm_forward.4} parent=0 // pred_check
    _
  $region43: #{model_nlm_forward.4} parent=0 // pred_check_branch
    %624 = sbr.rel (0) target = $region45
  $region44: #{model_nlm_forward.4} parent=0 // pred_region
    _
  $region45: #{model_nlm_forward.4} parent=0 // pred_fallthru
    _
  // Predicated region
  $region46: #{model_nlm_forward.4} parent=0 // pred_check
    _
  $region47: #{model_nlm_forward.4} parent=0 // pred_check_branch
    %626 = sbr.rel (0) target = $region49
  $region48: #{model_nlm_forward.4} parent=0 // pred_region
    _
  $region49: #{model_nlm_forward.4} parent=0 // pred_fallthru
    _
  // Predicated region
  $region50: #{model_nlm_forward.4} parent=0 // pred_check
    _
  $region51: #{model_nlm_forward.4} parent=0 // pred_check_branch
    %628 = sbr.rel (0) target = $region53
  $region52: #{model_nlm_forward.4} parent=0 // pred_region
    _
  $region53: #{model_nlm_forward.4} parent=0 // pred_fallthru
    _
  // Predicated region
  $region54: #{model_nlm_forward.4} parent=0 // pred_check
    _
  $region55: #{model_nlm_forward.4} parent=0 // pred_check_branch
    %630 = sbr.rel (0) target = $region57
  $region56: #{model_nlm_forward.4} parent=0 // pred_region
    _
  $region57: #{model_nlm_forward.4} parent=0 // pred_fallthru
    _
  // Predicated region
  $region58: #{model_nlm_forward.4} parent=0 // pred_check
    _
  $region59: #{model_nlm_forward.4} parent=0 // pred_check_branch
    %632 = sbr.rel (0) target = $region61
  $region60: #{model_nlm_forward.4} parent=0 // pred_region
    _
  $region61: #{model_nlm_forward.4} parent=0 // pred_fallthru
    _

// kernel: model_nlm_forward.5
$region0: #{model_nlm_forward.5}
  #allocation0 [shape = 'u32[]', space=smem, size = 0x4, offset = 0x4, fixed_abs, tag = 'smem constant byte address 0x4 - core index']
  #allocation1 [shape = 'u32[72,128]{1,0:T(1,128)}', space=vmem, size = 0x9000, scoped, tag = 'internal scratch']
  %s0 = inlined_call_operand.vmem [shape: f32[16,2], index: 0, kind: input, shape index: {}]
  %s1 = inlined_call_operand.vmem [shape: f32[8,16], index: 1, kind: input, shape index: {}]
  %s2 = inlined_call_operand.vmem [shape: f32[8,1], index: 2, kind: input, shape index: {}]
  %s3 = inlined_call_operand.vmem [shape: f32[24,16], index: 3, kind: input, shape index: {}]
  %s4 = inlined_call_operand.vmem [shape: f32[8,24], index: 4, kind: input, shape index: {}]
  %s5 = inlined_call_operand.vmem [shape: f32[8,1], index: 5, kind: input, shape index: {}]
  %s6 = inlined_call_operand.vmem [shape: f32[64,128], index: 6, kind: input, shape index: {}]
  %s7 = inlined_call_operand.vmem [shape: f32[8,64], index: 7, kind: input, shape index: {}]
  %s8 = inlined_call_operand.vmem [shape: f32[8,1], index: 8, kind: input, shape index: {}]
  %s9 = inlined_call_operand.vmem [shape: f32[96,1024], index: 9, kind: input, shape index: {}]
  %s10 = inlined_call_operand.vmem [shape: f32[8,96], index: 10, kind: input, shape index: {}]
  %s11 = inlined_call_operand.vmem [shape: f32[8,1], index: 11, kind: input, shape index: {}]
  %s12 = inlined_call_operand.vmem [shape: f32[8,2], index: 12, kind: output, shape index: {0}]
  %s13 = inlined_call_operand.vmem [shape: f32[8,16], index: 13, kind: output, shape index: {1}]
  %s14 = inlined_call_operand.vmem [shape: f32[8,128], index: 14, kind: output, shape index: {2}]
  %s15 = inlined_call_operand.vmem [shape: f32[8,1024], index: 15, kind: output, shape index: {3}]
  %16 = xla_tuple %s12, %s13, %s14, %s15
  %s17 = sld [smem:[#allocation0]]
  $region82: #{model_nlm_forward.5} parent=0
    _
  %s19 = ssub.s32 1, %s17
  %s20 = scalar_select 0, %s19, %s17
  // Predicated region
  $region2: #{model_nlm_forward.5} parent=0 // pred_check
    _
  $region3: #{model_nlm_forward.5} parent=0 // pred_check_branch
    %22 = sbr.rel (0) target = $region5
  $region4: #{model_nlm_forward.5} parent=0 // pred_region
    _
  $region5: #{model_nlm_forward.5} parent=0 // pred_fallthru
    _
  // Predicated region
  $region6: #{model_nlm_forward.5} parent=0 // pred_check
    _
  $region7: #{model_nlm_forward.5} parent=0 // pred_check_branch
    %24 = sbr.rel (0) target = $region9
  $region8: #{model_nlm_forward.5} parent=0 // pred_region
    _
  $region9: #{model_nlm_forward.5} parent=0 // pred_fallthru
    _
  // Predicated region
  $region10: #{model_nlm_forward.5} parent=0 // pred_check
    _
  $region11: #{model_nlm_forward.5} parent=0 // pred_check_branch
    %26 = sbr.rel (0) target = $region13
  $region12: #{model_nlm_forward.5} parent=0 // pred_region
    _
  $region13: #{model_nlm_forward.5} parent=0 // pred_fallthru
    _
  // Predicated region
  $region14: #{model_nlm_forward.5} parent=0 // pred_check
    _
  $region15: #{model_nlm_forward.5} parent=0 // pred_check_branch
    %28 = sbr.rel (0) target = $region17
  $region16: #{model_nlm_forward.5} parent=0 // pred_region
    _
  $region17: #{model_nlm_forward.5} parent=0 // pred_fallthru
    _
  // Predicated region
  $region18: #{model_nlm_forward.5} parent=0 // pred_check
    _
  $region19: #{model_nlm_forward.5} parent=0 // pred_check_branch
    %30 = sbr.rel (0) target = $region21
  $region20: #{model_nlm_forward.5} parent=0 // pred_region
    _
  $region21: #{model_nlm_forward.5} parent=0 // pred_fallthru
    _
  // Predicated region
  $region22: #{model_nlm_forward.5} parent=0 // pred_check
    _
  $region23: #{model_nlm_forward.5} parent=0 // pred_check_branch
    %32 = sbr.rel (0) target = $region25
  $region24: #{model_nlm_forward.5} parent=0 // pred_region
    _
  $region25: #{model_nlm_forward.5} parent=0 // pred_fallthru
    _
  // Predicated region
  $region26: #{model_nlm_forward.5} parent=0 // pred_check
    _
  $region27: #{model_nlm_forward.5} parent=0 // pred_check_branch
    %34 = sbr.rel (0) target = $region29
  $region28: #{model_nlm_forward.5} parent=0 // pred_region
    _
  $region29: #{model_nlm_forward.5} parent=0 // pred_fallthru
    _
  // Predicated region
  $region30: #{model_nlm_forward.5} parent=0 // pred_check
    _
  $region31: #{model_nlm_forward.5} parent=0 // pred_check_branch
    %36 = sbr.rel (0) target = $region33
  $region32: #{model_nlm_forward.5} parent=0 // pred_region
    _
  $region33: #{model_nlm_forward.5} parent=0 // pred_fallthru
    _
  // Predicated region
  $region34: #{model_nlm_forward.5} parent=0 // pred_check
    _
  $region35: #{model_nlm_forward.5} parent=0 // pred_check_branch
    %38 = sbr.rel (0) target = $region37
  $region36: #{model_nlm_forward.5} parent=0 // pred_region
    _
  $region37: #{model_nlm_forward.5} parent=0 // pred_fallthru
    _
  // Predicated region
  $region38: #{model_nlm_forward.5} parent=0 // pred_check
    _
  $region39: #{model_nlm_forward.5} parent=0 // pred_check_branch
    %40 = sbr.rel (0) target = $region41
  $region40: #{model_nlm_forward.5} parent=0 // pred_region
    _
  $region41: #{model_nlm_forward.5} parent=0 // pred_fallthru
    _
  // Predicated region
  $region42: #{model_nlm_forward.5} parent=0 // pred_check
    _
  $region43: #{model_nlm_forward.5} parent=0 // pred_check_branch
    %42 = sbr.rel (0) target = $region45
  $region44: #{model_nlm_forward.5} parent=0 // pred_region
    _
  $region45: #{model_nlm_forward.5} parent=0 // pred_fallthru
    _
  // Predicated region
  $region46: #{model_nlm_forward.5} parent=0 // pred_check
    _
  $region47: #{model_nlm_forward.5} parent=0 // pred_check_branch
    %44 = sbr.rel (0) target = $region49
  $region48: #{model_nlm_forward.5} parent=0 // pred_region
    _
  $region49: #{model_nlm_forward.5} parent=0 // pred_fallthru
    _
  %v45 = vld [vmem:[%s0] sm:$0xff]
  %v46 = vld [vmem:[%s0 + $0x8] sm:$0xff]
  %v47 = vld [vmem:[%s1] sm:$0xff]
  %v48 = vld [vmem:[%s2] sm:$0xff]
  %50 = vset.pattern.permute.xlu0 0
  %51 = vperm.xlu0 %50, %v48
  %v52 = vpop.permute.xlu0 %51
  %vm54 = vcmask 130048
  %v56 = vsel %vm54, %v47, 0
  %58 = vmatpush.msra.mxu0 0.0
  %59 = vmatpush.msra.mxu0 0.0
  %60 = vmatpush.msra.mxu0 0.0
  %61 = vmatpush.msra.mxu0 0.0
  %62 = vmatpush.msra.mxu0 0.0
  %63 = vmatpush.msra.mxu0 0.0
  %64 = vmatpush.msra.mxu0 0.0
  %65 = vmatpush.msra.mxu0 0.0
  %66 = vmatpush.msra.mxu0 0.0
  %67 = vmatpush.msra.mxu0 0.0
  %68 = vmatpush.msra.mxu0 0.0
  %69 = vmatpush.msra.mxu0 0.0
  %70 = vmatpush.msra.mxu0 0.0
  %71 = vmatpush.msra.mxu0 0.0
  %72 = vmatpush.msra.mxu0 %v46
  %73 = vmatpush.msra.mxu0 %v45
  %74 = vmatmul.f32.gmra.mxu0 %v56
  %v75 = vpop.f32.mrf.mxu0
  %v76 = vadd.f32 %v52, %v75
  %77 = vdwg.mxu0
  %v78 = vxor.u32 %v76, 2147483648
  %v79 = vmul.f32 %v78, 1.442695
  %v80 = vpow.pop %v79
  %v81 = vadd.f32 %v80, 1.0
  %v82 = vrcp.pop %v81
  %v83 = vmul.f32 %v81, %v82
  %v84 = vsub.f32 1.0, %v83
  %v85 = vmul.f32 %v82, %v84
  %v86 = vadd.f32 %v82, %v85
  %vm87 = vweird.f32 %v81
  %vm88 = vweird.f32 %v82
  %vm89 = vmor %vm87, %vm88
  %v90 = vsel %vm89, %v82, %v86
  %v91 = vand.u32 2147483647, %v81
  %vm92 = vcmp.eq.f32.partialorder %v91, 8.507059e+37
  %v93 = vand.u32 %v81, 2147483648
  %v94 = vor.u32 1.1754944e-38, %v93
  %v95 = vsel %vm92, %v94, %v90
  %v96 = vmul.f32 1.0, %v95
  %vm97 = vcmask 15360
  %98 = vst.msk [vmem:[%s12] sm:$0xff] %vm97, %v96
  %v99 = vld [vmem:[%s3] sm:$0xff]
  %v100 = vld [vmem:[%s3 + $0x8] sm:$0xff]
  %v101 = vld [vmem:[%s3 + $0x10] sm:$0xff]
  %v102 = vld [vmem:[%s4] sm:$0xff]
  %v103 = vld [vmem:[%s5] sm:$0xff]
  %105 = vset.pattern.permute.xlu0 0
  %106 = vperm.xlu0 %105, %v103
  %v107 = vpop.permute.xlu0 %106
  %vm109 = vcmask 195584
  %v111 = vsel %vm109, %v102, 0
  %113 = vmatpush.msra.mxu0 0.0
  %114 = vmatpush.msra.mxu0 0.0
  %115 = vmatpush.msra.mxu0 0.0
  %116 = vmatpush.msra.mxu0 0.0
  %117 = vmatpush.msra.mxu0 0.0
  %118 = vmatpush.msra.mxu0 0.0
  %119 = vmatpush.msra.mxu0 0.0
  %120 = vmatpush.msra.mxu0 0.0
  %121 = vmatpush.msra.mxu0 0.0
  %122 = vmatpush.msra.mxu0 0.0
  %123 = vmatpush.msra.mxu0 0.0
  %124 = vmatpush.msra.mxu0 0.0
  %125 = vmatpush.msra.mxu0 0.0
  %126 = vmatpush.msra.mxu0 %v101
  %127 = vmatpush.msra.mxu0 %v100
  %128 = vmatpush.msra.mxu0 %v99
  %129 = vmatmul.f32.gmra.mxu0 %v111
  %v130 = vpop.f32.mrf.mxu0
  %v131 = vadd.f32 %v107, %v130
  %132 = vdwg.mxu0
  %v133 = vxor.u32 %v131, 2147483648
  %v134 = vmul.f32 %v133, 1.442695
  %v135 = vpow.pop %v134
  %v136 = vadd.f32 %v135, 1.0
  %v137 = vrcp.pop %v136
  %v138 = vmul.f32 %v136, %v137
  %v139 = vsub.f32 1.0, %v138
  %v140 = vmul.f32 %v137, %v139
  %v141 = vadd.f32 %v137, %v140
  %vm142 = vweird.f32 %v136
  %vm143 = vweird.f32 %v137
  %vm144 = vmor %vm142, %vm143
  %v145 = vsel %vm144, %v137, %v141
  %v146 = vand.u32 2147483647, %v136
  %vm147 = vcmp.eq.f32.partialorder %v146, 8.507059e+37
  %v148 = vand.u32 %v136, 2147483648
  %v149 = vor.u32 1.1754944e-38, %v148
  %v150 = vsel %vm147, %v149, %v145
  %v151 = vmul.f32 1.0, %v150
  %152 = vst.msk [vmem:[%s13] sm:$0xff] %vm54, %v151
  %v153 = vld [vmem:[%s6] sm:$0xff]
  %v154 = vld [vmem:[%s6 + $0x8] sm:$0xff]
  %v155 = vld [vmem:[%s6 + $0x10] sm:$0xff]
  %v156 = vld [vmem:[%s6 + $0x18] sm:$0xff]
  %v157 = vld [vmem:[%s6 + $0x20] sm:$0xff]
  %v158 = vld [vmem:[%s6 + $0x28] sm:$0xff]
  %v159 = vld [vmem:[%s6 + $0x30] sm:$0xff]
  %v160 = vld [vmem:[%s6 + $0x38] sm:$0xff]
  %v161 = vld [vmem:[%s7] sm:$0xff]
  %v162 = vld [vmem:[%s8] sm:$0xff]
  %164 = vset.pattern.permute.xlu0 0
  %165 = vperm.xlu0 %164, %v162
  %v166 = vpop.permute.xlu0 %165
  %vm168 = vcmask 523264
  %v170 = vsel %vm168, %v161, 0
  %172 = vmatpush.msra.mxu0 0.0
  %173 = vmatpush.msra.mxu0 0.0
  %174 = vmatpush.msra.mxu0 0.0
  %175 = vmatpush.msra.mxu0 0.0
  %176 = vmatpush.msra.mxu0 0.0
  %177 = vmatpush.msra.mxu0 0.0
  %178 = vmatpush.msra.mxu0 0.0
  %179 = vmatpush.msra.mxu0 0.0
  %180 = vmatpush.msra.mxu0 %v160
  %181 = vmatpush.msra.mxu0 %v159
  %182 = vmatpush.msra.mxu0 %v158
  %183 = vmatpush.msra.mxu0 %v157
  %184 = vmatpush.msra.mxu0 %v156
  %185 = vmatpush.msra.mxu0 %v155
  %186 = vmatpush.msra.mxu0 %v154
  %187 = vmatpush.msra.mxu0 %v153
  %188 = vmatmul.f32.gmra.mxu0 %v170
  %v189 = vpop.f32.mrf.mxu0
  %v190 = vadd.f32 %v166, %v189
  %191 = vdwg.mxu0
  %v192 = vxor.u32 %v190, 2147483648
  %v193 = vmul.f32 %v192, 1.442695
  %v194 = vpow.pop %v193
  %v195 = vadd.f32 %v194, 1.0
  %v196 = vrcp.pop %v195
  %v197 = vmul.f32 %v195, %v196
  %v198 = vsub.f32 1.0, %v197
  %v199 = vmul.f32 %v196, %v198
  %v200 = vadd.f32 %v196, %v199
  %vm201 = vweird.f32 %v195
  %vm202 = vweird.f32 %v196
  %vm203 = vmor %vm201, %vm202
  %v204 = vsel %vm203, %v196, %v200
  %v205 = vand.u32 2147483647, %v195
  %vm206 = vcmp.eq.f32.partialorder %v205, 8.507059e+37
  %v207 = vand.u32 %v195, 2147483648
  %v208 = vor.u32 1.1754944e-38, %v207
  %v209 = vsel %vm206, %v208, %v204
  %v210 = vmul.f32 1.0, %v209
  %211 = vst [vmem:[%s14] sm:$0xff] %v210
  %v212 = vld [vmem:[%s9] sm:$0xff]
  %v213 = vld [vmem:[%s9 + $0x8] sm:$0xff]
  %v214 = vld [vmem:[%s9 + $0x10] sm:$0xff]
  %v215 = vld [vmem:[%s9 + $0x18] sm:$0xff]
  %v216 = vld [vmem:[%s9 + $0x20] sm:$0xff]
  %v217 = vld [vmem:[%s9 + $0x28] sm:$0xff]
  %v218 = vld [vmem:[%s9 + $0x30] sm:$0xff]
  %v219 = vld [vmem:[%s9 + $0x38] sm:$0xff]
  %v220 = vld [vmem:[%s9 + $0x40] sm:$0xff]
  %v221 = vld [vmem:[%s9 + $0x48] sm:$0xff]
  %v222 = vld [vmem:[%s9 + $0x50] sm:$0xff]
  %v223 = vld [vmem:[%s9 + $0x58] sm:$0xff]
  %v224 = vld [vmem:[%s9 + $0x60] sm:$0xff]
  %v225 = vld [vmem:[%s9 + $0x68] sm:$0xff]
  %v226 = vld [vmem:[%s9 + $0x70] sm:$0xff]
  %v227 = vld [vmem:[%s9 + $0x78] sm:$0xff]
  %v228 = vld [vmem:[%s9 + $0x80] sm:$0xff]
  %v229 = vld [vmem:[%s9 + $0x88] sm:$0xff]
  %v230 = vld [vmem:[%s9 + $0x90] sm:$0xff]
  %v231 = vld [vmem:[%s9 + $0x98] sm:$0xff]
  %v232 = vld [vmem:[%s9 + $0xa0] sm:$0xff]
  %v233 = vld [vmem:[%s9 + $0xa8] sm:$0xff]
  %v234 = vld [vmem:[%s9 + $0xb0] sm:$0xff]
  %v235 = vld [vmem:[%s9 + $0xb8] sm:$0xff]
  %v236 = vld [vmem:[%s9 + $0xc0] sm:$0xff]
  %v237 = vld [vmem:[%s9 + $0xc8] sm:$0xff]
  %v238 = vld [vmem:[%s9 + $0xd0] sm:$0xff]
  %v239 = vld [vmem:[%s9 + $0xd8] sm:$0xff]
  %v240 = vld [vmem:[%s9 + $0xe0] sm:$0xff]
  %v241 = vld [vmem:[%s9 + $0xe8] sm:$0xff]
  %v242 = vld [vmem:[%s9 + $0xf0] sm:$0xff]
  %v243 = vld [vmem:[%s9 + $0xf8] sm:$0xff]
  %v244 = vld [vmem:[%s9 + $0x100] sm:$0xff]
  %v245 = vld [vmem:[%s9 + $0x108] sm:$0xff]
  %v246 = vld [vmem:[%s9 + $0x110] sm:$0xff]
  %v247 = vld [vmem:[%s9 + $0x118] sm:$0xff]
  %v248 = vld [vmem:[%s9 + $0x120] sm:$0xff]
  %v249 = vld [vmem:[%s9 + $0x128] sm:$0xff]
  %v250 = vld [vmem:[%s9 + $0x130] sm:$0xff]
  %v251 = vld [vmem:[%s9 + $0x138] sm:$0xff]
  %v252 = vld [vmem:[%s9 + $0x140] sm:$0xff]
  %v253 = vld [vmem:[%s9 + $0x148] sm:$0xff]
  %v254 = vld [vmem:[%s9 + $0x150] sm:$0xff]
  %v255 = vld [vmem:[%s9 + $0x158] sm:$0xff]
  %v256 = vld [vmem:[%s9 + $0x160] sm:$0xff]
  %v257 = vld [vmem:[%s9 + $0x168] sm:$0xff]
  %v258 = vld [vmem:[%s9 + $0x170] sm:$0xff]
  %v259 = vld [vmem:[%s9 + $0x178] sm:$0xff]
  %v260 = vld [vmem:[%s9 + $0x180] sm:$0xff]
  %v261 = vld [vmem:[%s9 + $0x188] sm:$0xff]
  %v262 = vld [vmem:[%s9 + $0x190] sm:$0xff]
  %v263 = vld [vmem:[%s9 + $0x198] sm:$0xff]
  %v264 = vld [vmem:[%s9 + $0x1a0] sm:$0xff]
  %v265 = vld [vmem:[%s9 + $0x1a8] sm:$0xff]
  %v266 = vld [vmem:[%s9 + $0x1b0] sm:$0xff]
  %v267 = vld [vmem:[%s9 + $0x1b8] sm:$0xff]
  %v268 = vld [vmem:[%s9 + $0x1c0] sm:$0xff]
  %v269 = vld [vmem:[%s9 + $0x1c8] sm:$0xff]
  %v270 = vld [vmem:[%s9 + $0x1d0] sm:$0xff]
  %v271 = vld [vmem:[%s9 + $0x1d8] sm:$0xff]
  %v272 = vld [vmem:[%s9 + $0x1e0] sm:$0xff]
  %v273 = vld [vmem:[%s9 + $0x1e8] sm:$0xff]
  %v274 = vld [vmem:[%s9 + $0x1f0] sm:$0xff]
  %v275 = vld [vmem:[%s9 + $0x1f8] sm:$0xff]
  %v276 = vld [vmem:[%s9 + $0x200] sm:$0xff]
  %v277 = vld [vmem:[%s9 + $0x208] sm:$0xff]
  %v278 = vld [vmem:[%s9 + $0x210] sm:$0xff]
  %v279 = vld [vmem:[%s9 + $0x218] sm:$0xff]
  %v280 = vld [vmem:[%s9 + $0x220] sm:$0xff]
  %v281 = vld [vmem:[%s9 + $0x228] sm:$0xff]
  %v282 = vld [vmem:[%s9 + $0x230] sm:$0xff]
  %v283 = vld [vmem:[%s9 + $0x238] sm:$0xff]
  %v284 = vld [vmem:[%s9 + $0x240] sm:$0xff]
  %v285 = vld [vmem:[%s9 + $0x248] sm:$0xff]
  %v286 = vld [vmem:[%s9 + $0x250] sm:$0xff]
  %v287 = vld [vmem:[%s9 + $0x258] sm:$0xff]
  %v288 = vld [vmem:[%s9 + $0x260] sm:$0xff]
  %v289 = vld [vmem:[%s9 + $0x268] sm:$0xff]
  %v290 = vld [vmem:[%s9 + $0x270] sm:$0xff]
  %v291 = vld [vmem:[%s9 + $0x278] sm:$0xff]
  %v292 = vld [vmem:[%s9 + $0x280] sm:$0xff]
  %v293 = vld [vmem:[%s9 + $0x288] sm:$0xff]
  %v294 = vld [vmem:[%s9 + $0x290] sm:$0xff]
  %v295 = vld [vmem:[%s9 + $0x298] sm:$0xff]
  %v296 = vld [vmem:[%s9 + $0x2a0] sm:$0xff]
  %v297 = vld [vmem:[%s9 + $0x2a8] sm:$0xff]
  %v298 = vld [vmem:[%s9 + $0x2b0] sm:$0xff]
  %v299 = vld [vmem:[%s9 + $0x2b8] sm:$0xff]
  %v300 = vld [vmem:[%s9 + $0x2c0] sm:$0xff]
  %v301 = vld [vmem:[%s9 + $0x2c8] sm:$0xff]
  %v302 = vld [vmem:[%s9 + $0x2d0] sm:$0xff]
  %v303 = vld [vmem:[%s9 + $0x2d8] sm:$0xff]
  %v304 = vld [vmem:[%s9 + $0x2e0] sm:$0xff]
  %v305 = vld [vmem:[%s9 + $0x2e8] sm:$0xff]
  %v306 = vld [vmem:[%s9 + $0x2f0] sm:$0xff]
  %v307 = vld [vmem:[%s9 + $0x2f8] sm:$0xff]
  %v308 = vld [vmem:[%s10] sm:$0xff]
  %v309 = vld [vmem:[%s11] sm:$0xff]
  %311 = vset.pattern.permute.xlu0 0
  %312 = vperm.xlu0 %311, %v309
  %v313 = vpop.permute.xlu0 %312
  %vm315 = vcmask 785408
  %v317 = vsel %vm315, %v308, 0
  %319 = vmatpush.msra.mxu0 0.0
  %320 = vmatpush.msra.mxu0 0.0
  %321 = vmatpush.msra.mxu0 0.0
  %322 = vmatpush.msra.mxu0 0.0
  %323 = vmatpush.msra.mxu0 %v300
  %324 = vmatpush.msra.mxu0 %v292
  %325 = vmatpush.msra.mxu0 %v284
  %326 = vmatpush.msra.mxu0 %v276
  %327 = vmatpush.msra.mxu0 %v268
  %328 = vmatpush.msra.mxu0 %v260
  %329 = vmatpush.msra.mxu0 %v252
  %330 = vmatpush.msra.mxu0 %v244
  %331 = vmatpush.msra.mxu0 %v236
  %332 = vmatpush.msra.mxu0 %v228
  %333 = vmatpush.msra.mxu0 %v220
  %334 = vmatpush.msra.mxu0 %v212
  %335 = vmatmul.f32.gmra.mxu0 %v317
  %v336 = vpop.f32.mrf.mxu0
  %v337 = vadd.f32 %v313, %v336
  %338 = vdwg.mxu0
  %339 = vmatpush.msra.mxu0 0.0
  %340 = vmatpush.msra.mxu0 0.0
  %341 = vmatpush.msra.mxu0 0.0
  %342 = vmatpush.msra.mxu0 0.0
  %343 = vmatpush.msra.mxu0 %v301
  %344 = vmatpush.msra.mxu0 %v293
  %345 = vmatpush.msra.mxu0 %v285
  %346 = vmatpush.msra.mxu0 %v277
  %347 = vmatpush.msra.mxu0 %v269
  %348 = vmatpush.msra.mxu0 %v261
  %349 = vmatpush.msra.mxu0 %v253
  %350 = vmatpush.msra.mxu0 %v245
  %351 = vmatpush.msra.mxu0 %v237
  %352 = vmatpush.msra.mxu0 %v229
  %353 = vmatpush.msra.mxu0 %v221
  %354 = vmatpush.msra.mxu0 %v213
  %355 = vmatmul.f32.gmra.mxu0 %v317
  %v356 = vpop.f32.mrf.mxu0
  %v357 = vadd.f32 %v313, %v356
  %358 = vdwg.mxu0
  %359 = vmatpush.msra.mxu0 0.0
  %360 = vmatpush.msra.mxu0 0.0
  %361 = vmatpush.msra.mxu0 0.0
  %362 = vmatpush.msra.mxu0 0.0
  %363 = vmatpush.msra.mxu0 %v302
  %364 = vmatpush.msra.mxu0 %v294
  %365 = vmatpush.msra.mxu0 %v286
  %366 = vmatpush.msra.mxu0 %v278
  %367 = vmatpush.msra.mxu0 %v270
  %368 = vmatpush.msra.mxu0 %v262
  %369 = vmatpush.msra.mxu0 %v254
  %370 = vmatpush.msra.mxu0 %v246
  %371 = vmatpush.msra.mxu0 %v238
  %372 = vmatpush.msra.mxu0 %v230
  %373 = vmatpush.msra.mxu0 %v222
  %374 = vmatpush.msra.mxu0 %v214
  %375 = vmatmul.f32.gmra.mxu0 %v317
  %v376 = vpop.f32.mrf.mxu0
  %v377 = vadd.f32 %v313, %v376
  %378 = vdwg.mxu0
  %379 = vmatpush.msra.mxu0 0.0
  %380 = vmatpush.msra.mxu0 0.0
  %381 = vmatpush.msra.mxu0 0.0
  %382 = vmatpush.msra.mxu0 0.0
  %383 = vmatpush.msra.mxu0 %v303
  %384 = vmatpush.msra.mxu0 %v295
  %385 = vmatpush.msra.mxu0 %v287
  %386 = vmatpush.msra.mxu0 %v279
  %387 = vmatpush.msra.mxu0 %v271
  %388 = vmatpush.msra.mxu0 %v263
  %389 = vmatpush.msra.mxu0 %v255
  %390 = vmatpush.msra.mxu0 %v247
  %391 = vmatpush.msra.mxu0 %v239
  %392 = vmatpush.msra.mxu0 %v231
  %393 = vmatpush.msra.mxu0 %v223
  %394 = vmatpush.msra.mxu0 %v215
  %395 = vmatmul.f32.gmra.mxu0 %v317
  %v396 = vpop.f32.mrf.mxu0
  %v397 = vadd.f32 %v313, %v396
  %398 = vdwg.mxu0
  %399 = vmatpush.msra.mxu0 0.0
  %400 = vmatpush.msra.mxu0 0.0
  %401 = vmatpush.msra.mxu0 0.0
  %402 = vmatpush.msra.mxu0 0.0
  %403 = vmatpush.msra.mxu0 %v304
  %404 = vmatpush.msra.mxu0 %v296
  %405 = vmatpush.msra.mxu0 %v288
  %406 = vmatpush.msra.mxu0 %v280
  %407 = vmatpush.msra.mxu0 %v272
  %408 = vmatpush.msra.mxu0 %v264
  %409 = vmatpush.msra.mxu0 %v256
  %410 = vmatpush.msra.mxu0 %v248
  %411 = vmatpush.msra.mxu0 %v240
  %412 = vmatpush.msra.mxu0 %v232
  %413 = vmatpush.msra.mxu0 %v224
  %414 = vmatpush.msra.mxu0 %v216
  %415 = vmatmul.f32.gmra.mxu0 %v317
  %v416 = vpop.f32.mrf.mxu0
  %v417 = vadd.f32 %v313, %v416
  %418 = vdwg.mxu0
  %419 = vmatpush.msra.mxu0 0.0
  %420 = vmatpush.msra.mxu0 0.0
  %421 = vmatpush.msra.mxu0 0.0
  %422 = vmatpush.msra.mxu0 0.0
  %423 = vmatpush.msra.mxu0 %v305
  %424 = vmatpush.msra.mxu0 %v297
  %425 = vmatpush.msra.mxu0 %v289
  %426 = vmatpush.msra.mxu0 %v281
  %427 = vmatpush.msra.mxu0 %v273
  %428 = vmatpush.msra.mxu0 %v265
  %429 = vmatpush.msra.mxu0 %v257
  %430 = vmatpush.msra.mxu0 %v249
  %431 = vmatpush.msra.mxu0 %v241
  %432 = vmatpush.msra.mxu0 %v233
  %433 = vmatpush.msra.mxu0 %v225
  %434 = vmatpush.msra.mxu0 %v217
  %435 = vmatmul.f32.gmra.mxu0 %v317
  %v436 = vpop.f32.mrf.mxu0
  %v437 = vadd.f32 %v313, %v436
  %438 = vdwg.mxu0
  %439 = vmatpush.msra.mxu0 0.0
  %440 = vmatpush.msra.mxu0 0.0
  %441 = vmatpush.msra.mxu0 0.0
  %442 = vmatpush.msra.mxu0 0.0
  %443 = vmatpush.msra.mxu0 %v306
  %444 = vmatpush.msra.mxu0 %v298
  %445 = vmatpush.msra.mxu0 %v290
  %446 = vmatpush.msra.mxu0 %v282
  %447 = vmatpush.msra.mxu0 %v274
  %448 = vmatpush.msra.mxu0 %v266
  %449 = vmatpush.msra.mxu0 %v258
  %450 = vmatpush.msra.mxu0 %v250
  %451 = vmatpush.msra.mxu0 %v242
  %452 = vmatpush.msra.mxu0 %v234
  %453 = vmatpush.msra.mxu0 %v226
  %454 = vmatpush.msra.mxu0 %v218
  %455 = vmatmul.f32.gmra.mxu0 %v317
  %v456 = vpop.f32.mrf.mxu0
  %v457 = vadd.f32 %v313, %v456
  %458 = vdwg.mxu0
  %459 = vmatpush.msra.mxu0 0.0
  %460 = vmatpush.msra.mxu0 0.0
  %461 = vmatpush.msra.mxu0 0.0
  %462 = vmatpush.msra.mxu0 0.0
  %463 = vmatpush.msra.mxu0 %v307
  %464 = vmatpush.msra.mxu0 %v299
  %465 = vmatpush.msra.mxu0 %v291
  %466 = vmatpush.msra.mxu0 %v283
  %467 = vmatpush.msra.mxu0 %v275
  %468 = vmatpush.msra.mxu0 %v267
  %469 = vmatpush.msra.mxu0 %v259
  %470 = vmatpush.msra.mxu0 %v251
  %471 = vmatpush.msra.mxu0 %v243
  %472 = vmatpush.msra.mxu0 %v235
  %473 = vmatpush.msra.mxu0 %v227
  %474 = vmatpush.msra.mxu0 %v219
  %475 = vmatmul.f32.gmra.mxu0 %v317
  %v476 = vpop.f32.mrf.mxu0
  %v477 = vadd.f32 %v313, %v476
  %478 = vdwg.mxu0
  %v479 = vxor.u32 %v337, 2147483648
  %v480 = vxor.u32 %v357, 2147483648
  %v481 = vxor.u32 %v377, 2147483648
  %v482 = vxor.u32 %v397, 2147483648
  %v483 = vxor.u32 %v417, 2147483648
  %v484 = vxor.u32 %v437, 2147483648
  %v485 = vxor.u32 %v457, 2147483648
  %v486 = vxor.u32 %v477, 2147483648
  %v487 = vmul.f32 %v479, 1.442695
  %v488 = vpow.pop %v487
  %v489 = vmul.f32 %v480, 1.442695
  %v490 = vpow.pop %v489
  %v491 = vmul.f32 %v481, 1.442695
  %v492 = vpow.pop %v491
  %v493 = vmul.f32 %v482, 1.442695
  %v494 = vpow.pop %v493
  %v495 = vmul.f32 %v483, 1.442695
  %v496 = vpow.pop %v495
  %v497 = vmul.f32 %v484, 1.442695
  %v498 = vpow.pop %v497
  %v499 = vmul.f32 %v485, 1.442695
  %v500 = vpow.pop %v499
  %v501 = vmul.f32 %v486, 1.442695
  %v502 = vpow.pop %v501
  %v503 = vadd.f32 %v488, 1.0
  %v504 = vadd.f32 %v490, 1.0
  %v505 = vadd.f32 %v492, 1.0
  %v506 = vadd.f32 %v494, 1.0
  %v507 = vadd.f32 %v496, 1.0
  %v508 = vadd.f32 %v498, 1.0
  %v509 = vadd.f32 %v500, 1.0
  %v510 = vadd.f32 %v502, 1.0
  %v511 = vrcp.pop %v503
  %v512 = vmul.f32 %v503, %v511
  %v513 = vsub.f32 1.0, %v512
  %v514 = vmul.f32 %v511, %v513
  %v515 = vadd.f32 %v511, %v514
  %vm516 = vweird.f32 %v503
  %vm517 = vweird.f32 %v511
  %vm518 = vmor %vm516, %vm517
  %v519 = vsel %vm518, %v511, %v515
  %v520 = vand.u32 2147483647, %v503
  %vm521 = vcmp.eq.f32.partialorder %v520, 8.507059e+37
  %v522 = vand.u32 %v503, 2147483648
  %v523 = vor.u32 1.1754944e-38, %v522
  %v524 = vsel %vm521, %v523, %v519
  %v525 = vmul.f32 1.0, %v524
  %v526 = vrcp.pop %v504
  %v527 = vmul.f32 %v504, %v526
  %v528 = vsub.f32 1.0, %v527
  %v529 = vmul.f32 %v526, %v528
  %v530 = vadd.f32 %v526, %v529
  %vm531 = vweird.f32 %v504
  %vm532 = vweird.f32 %v526
  %vm533 = vmor %vm531, %vm532
  %v534 = vsel %vm533, %v526, %v530
  %v535 = vand.u32 2147483647, %v504
  %vm536 = vcmp.eq.f32.partialorder %v535, 8.507059e+37
  %v537 = vand.u32 %v504, 2147483648
  %v538 = vor.u32 1.1754944e-38, %v537
  %v539 = vsel %vm536, %v538, %v534
  %v540 = vmul.f32 1.0, %v539
  %v541 = vrcp.pop %v505
  %v542 = vmul.f32 %v505, %v541
  %v543 = vsub.f32 1.0, %v542
  %v544 = vmul.f32 %v541, %v543
  %v545 = vadd.f32 %v541, %v544
  %vm546 = vweird.f32 %v505
  %vm547 = vweird.f32 %v541
  %vm548 = vmor %vm546, %vm547
  %v549 = vsel %vm548, %v541, %v545
  %v550 = vand.u32 2147483647, %v505
  %vm551 = vcmp.eq.f32.partialorder %v550, 8.507059e+37
  %v552 = vand.u32 %v505, 2147483648
  %v553 = vor.u32 1.1754944e-38, %v552
  %v554 = vsel %vm551, %v553, %v549
  %v555 = vmul.f32 1.0, %v554
  %v556 = vrcp.pop %v506
  %v557 = vmul.f32 %v506, %v556
  %v558 = vsub.f32 1.0, %v557
  %v559 = vmul.f32 %v556, %v558
  %v560 = vadd.f32 %v556, %v559
  %vm561 = vweird.f32 %v506
  %vm562 = vweird.f32 %v556
  %vm563 = vmor %vm561, %vm562
  %v564 = vsel %vm563, %v556, %v560
  %v565 = vand.u32 2147483647, %v506
  %vm566 = vcmp.eq.f32.partialorder %v565, 8.507059e+37
  %v567 = vand.u32 %v506, 2147483648
  %v568 = vor.u32 1.1754944e-38, %v567
  %v569 = vsel %vm566, %v568, %v564
  %v570 = vmul.f32 1.0, %v569
  %v571 = vrcp.pop %v507
  %v572 = vmul.f32 %v507, %v571
  %v573 = vsub.f32 1.0, %v572
  %v574 = vmul.f32 %v571, %v573
  %v575 = vadd.f32 %v571, %v574
  %vm576 = vweird.f32 %v507
  %vm577 = vweird.f32 %v571
  %vm578 = vmor %vm576, %vm577
  %v579 = vsel %vm578, %v571, %v575
  %v580 = vand.u32 2147483647, %v507
  %vm581 = vcmp.eq.f32.partialorder %v580, 8.507059e+37
  %v582 = vand.u32 %v507, 2147483648
  %v583 = vor.u32 1.1754944e-38, %v582
  %v584 = vsel %vm581, %v583, %v579
  %v585 = vmul.f32 1.0, %v584
  %v586 = vrcp.pop %v508
  %v587 = vmul.f32 %v508, %v586
  %v588 = vsub.f32 1.0, %v587
  %v589 = vmul.f32 %v586, %v588
  %v590 = vadd.f32 %v586, %v589
  %vm591 = vweird.f32 %v508
  %vm592 = vweird.f32 %v586
  %vm593 = vmor %vm591, %vm592
  %v594 = vsel %vm593, %v586, %v590
  %v595 = vand.u32 2147483647, %v508
  %vm596 = vcmp.eq.f32.partialorder %v595, 8.507059e+37
  %v597 = vand.u32 %v508, 2147483648
  %v598 = vor.u32 1.1754944e-38, %v597
  %v599 = vsel %vm596, %v598, %v594
  %v600 = vmul.f32 1.0, %v599
  %v601 = vrcp.pop %v509
  %v602 = vmul.f32 %v509, %v601
  %v603 = vsub.f32 1.0, %v602
  %v604 = vmul.f32 %v601, %v603
  %v605 = vadd.f32 %v601, %v604
  %vm606 = vweird.f32 %v509
  %vm607 = vweird.f32 %v601
  %vm608 = vmor %vm606, %vm607
  %v609 = vsel %vm608, %v601, %v605
  %v610 = vand.u32 2147483647, %v509
  %vm611 = vcmp.eq.f32.partialorder %v610, 8.507059e+37
  %v612 = vand.u32 %v509, 2147483648
  %v613 = vor.u32 1.1754944e-38, %v612
  %v614 = vsel %vm611, %v613, %v609
  %v615 = vmul.f32 1.0, %v614
  %v616 = vrcp.pop %v510
  %v617 = vmul.f32 %v510, %v616
  %v618 = vsub.f32 1.0, %v617
  %v619 = vmul.f32 %v616, %v618
  %v620 = vadd.f32 %v616, %v619
  %vm621 = vweird.f32 %v510
  %vm622 = vweird.f32 %v616
  %vm623 = vmor %vm621, %vm622
  %v624 = vsel %vm623, %v616, %v620
  %v625 = vand.u32 2147483647, %v510
  %vm626 = vcmp.eq.f32.partialorder %v625, 8.507059e+37
  %v627 = vand.u32 %v510, 2147483648
  %v628 = vor.u32 1.1754944e-38, %v627
  %v629 = vsel %vm626, %v628, %v624
  %v630 = vmul.f32 1.0, %v629
  %631 = vst [vmem:[%s15] sm:$0xff] %v525
  %632 = vst [vmem:[%s15 + $0x8] sm:$0xff] %v540
  %633 = vst [vmem:[%s15 + $0x10] sm:$0xff] %v555
  %634 = vst [vmem:[%s15 + $0x18] sm:$0xff] %v570
  %635 = vst [vmem:[%s15 + $0x20] sm:$0xff] %v585
  %636 = vst [vmem:[%s15 + $0x28] sm:$0xff] %v600
  %637 = vst [vmem:[%s15 + $0x30] sm:$0xff] %v615
  %638 = vst [vmem:[%s15 + $0x38] sm:$0xff] %v630
  // Predicated region
  $region50: #{model_nlm_forward.5} parent=0 // pred_check
    _
  $region51: #{model_nlm_forward.5} parent=0 // pred_check_branch
    %640 = sbr.rel (0) target = $region53
  $region52: #{model_nlm_forward.5} parent=0 // pred_region
    _
  $region53: #{model_nlm_forward.5} parent=0 // pred_fallthru
    _
  // Predicated region
  $region54: #{model_nlm_forward.5} parent=0 // pred_check
    _
  $region55: #{model_nlm_forward.5} parent=0 // pred_check_branch
    %642 = sbr.rel (0) target = $region57
  $region56: #{model_nlm_forward.5} parent=0 // pred_region
    _
  $region57: #{model_nlm_forward.5} parent=0 // pred_fallthru
    _
  // Predicated region
  $region58: #{model_nlm_forward.5} parent=0 // pred_check
    _
  $region59: #{model_nlm_forward.5} parent=0 // pred_check_branch
    %644 = sbr.rel (0) target = $region61
  $region60: #{model_nlm_forward.5} parent=0 // pred_region
    _
  $region61: #{model_nlm_forward.5} parent=0 // pred_fallthru
    _
  // Predicated region
  $region62: #{model_nlm_forward.5} parent=0 // pred_check
    _
  $region63: #{model_nlm_forward.5} parent=0 // pred_check_branch
    %646 = sbr.rel (0) target = $region65
  $region64: #{model_nlm_forward.5} parent=0 // pred_region
    _
  $region65: #{model_nlm_forward.5} parent=0 // pred_fallthru
    _
  // Predicated region
  $region66: #{model_nlm_forward.5} parent=0 // pred_check
    _
  $region67: #{model_nlm_forward.5} parent=0 // pred_check_branch
    %648 = sbr.rel (0) target = $region69
  $region68: #{model_nlm_forward.5} parent=0 // pred_region
    _
  $region69: #{model_nlm_forward.5} parent=0 // pred_fallthru
    _
  // Predicated region
  $region70: #{model_nlm_forward.5} parent=0 // pred_check
    _
  $region71: #{model_nlm_forward.5} parent=0 // pred_check_branch
    %650 = sbr.rel (0) target = $region73
  $region72: #{model_nlm_forward.5} parent=0 // pred_region
    _
  $region73: #{model_nlm_forward.5} parent=0 // pred_fallthru
    _
  // Predicated region
  $region74: #{model_nlm_forward.5} parent=0 // pred_check
    _
  $region75: #{model_nlm_forward.5} parent=0 // pred_check_branch
    %652 = sbr.rel (0) target = $region77
  $region76: #{model_nlm_forward.5} parent=0 // pred_region
    _
  $region77: #{model_nlm_forward.5} parent=0 // pred_fallthru
    _
  // Predicated region
  $region78: #{model_nlm_forward.5} parent=0 // pred_check
    _
  $region79: #{model_nlm_forward.5} parent=0 // pred_check_branch
    %654 = sbr.rel (0) target = $region81
  $region80: #{model_nlm_forward.5} parent=0 // pred_region
    _
  $region81: #{model_nlm_forward.5} parent=0 // pred_fallthru
    _

// kernel: model_nlm_forward.6
$region0: #{model_nlm_forward.6}
  #allocation0 [shape = 'u32[]', space=smem, size = 0x4, offset = 0x4, fixed_abs, tag = 'smem constant byte address 0x4 - core index']
  #allocation1 [shape = 'u32[72,128]{1,0:T(1,128)}', space=vmem, size = 0x9000, scoped, tag = 'internal scratch']
  %s0 = inlined_call_operand.vmem [shape: f32[24,2], index: 0, kind: input, shape index: {}]
  %s1 = inlined_call_operand.vmem [shape: f32[8,24], index: 1, kind: input, shape index: {}]
  %s2 = inlined_call_operand.vmem [shape: f32[8,1], index: 2, kind: input, shape index: {}]
  %s3 = inlined_call_operand.vmem [shape: f32[32,16], index: 3, kind: input, shape index: {}]
  %s4 = inlined_call_operand.vmem [shape: f32[8,32], index: 4, kind: input, shape index: {}]
  %s5 = inlined_call_operand.vmem [shape: f32[8,1], index: 5, kind: input, shape index: {}]
  %s6 = inlined_call_operand.vmem [shape: f32[64,128], index: 6, kind: input, shape index: {}]
  %s7 = inlined_call_operand.vmem [shape: f32[8,64], index: 7, kind: input, shape index: {}]
  %s8 = inlined_call_operand.vmem [shape: f32[8,1], index: 8, kind: input, shape index: {}]
  %s9 = inlined_call_operand.vmem [shape: f32[96,1024], index: 9, kind: input, shape index: {}]
  %s10 = inlined_call_operand.vmem [shape: f32[8,96], index: 10, kind: input, shape index: {}]
  %s11 = inlined_call_operand.vmem [shape: f32[8,1], index: 11, kind: input, shape index: {}]
  %s12 = inlined_call_operand.hbm [shape: f32[8,2], index: 12, kind: output, shape index: {0}]
  %s13 = inlined_call_operand.hbm [shape: f32[8,16], index: 13, kind: output, shape index: {1}]
  %s14 = inlined_call_operand.vmem [shape: f32[8,128], index: 14, kind: output, shape index: {2}]
  %s15 = inlined_call_operand.hbm [shape: f32[8,1024], index: 15, kind: output, shape index: {3}]
  %16 = xla_tuple %s12, %s13, %s14, %s15
  %s17 = sld [smem:[#allocation0]]
  $region82: #{model_nlm_forward.6} parent=0
    _
  %s19 = ssub.s32 1, %s17
  %s20 = scalar_select 0, %s19, %s17
  $region1: #{model_nlm_forward.6} parent=0
    #allocation2 [shape = 'u8[4096]{0}', space=vmem, size = 0x1000, scoped, tag = 'output window, operand 0, single buffered']
    #allocation3 [shape = 's32[1]{0}', space=sflag, size = 0x4, scoped, tag = 'scoped memory for model_nlm_forward.6']
    #allocation4 [shape = 'u8[4096]{0}', space=vmem, size = 0x1000, scoped, tag = 'output window, operand 1, single buffered']
    #allocation5 [shape = 's32[1]{0}', space=sflag, size = 0x4, scoped, tag = 'scoped memory for model_nlm_forward.6']
    #allocation6 [shape = 'u8[32768]{0}', space=vmem, size = 0x8000, scoped, tag = 'output window, operand 3, single buffered']
    %21 = vsyncpa [#allocation3], 0
    %22 = vsyncpa [#allocation5], 0
    // Predicated region
    $region2: #{model_nlm_forward.6} parent=1 // pred_check
      _
    $region3: #{model_nlm_forward.6} parent=1 // pred_check_branch
      %24 = sbr.rel (0) target = $region5
    $region4: #{model_nlm_forward.6} parent=1 // pred_region
      _
    $region5: #{model_nlm_forward.6} parent=1 // pred_fallthru
      _
    // Predicated region
    $region6: #{model_nlm_forward.6} parent=1 // pred_check
      _
    $region7: #{model_nlm_forward.6} parent=1 // pred_check_branch
      %26 = sbr.rel (0) target = $region9
    $region8: #{model_nlm_forward.6} parent=1 // pred_region
      _
    $region9: #{model_nlm_forward.6} parent=1 // pred_fallthru
      _
    // Predicated region
    $region10: #{model_nlm_forward.6} parent=1 // pred_check
      _
    $region11: #{model_nlm_forward.6} parent=1 // pred_check_branch
      %28 = sbr.rel (0) target = $region13
    $region12: #{model_nlm_forward.6} parent=1 // pred_region
      _
    $region13: #{model_nlm_forward.6} parent=1 // pred_fallthru
      _
    // Predicated region
    $region14: #{model_nlm_forward.6} parent=1 // pred_check
      _
    $region15: #{model_nlm_forward.6} parent=1 // pred_check_branch
      %30 = sbr.rel (0) target = $region17
    $region16: #{model_nlm_forward.6} parent=1 // pred_region
      _
    $region17: #{model_nlm_forward.6} parent=1 // pred_fallthru
      _
    // Predicated region
    $region18: #{model_nlm_forward.6} parent=1 // pred_check
      _
    $region19: #{model_nlm_forward.6} parent=1 // pred_check_branch
      %32 = sbr.rel (0) target = $region21
    $region20: #{model_nlm_forward.6} parent=1 // pred_region
      _
    $region21: #{model_nlm_forward.6} parent=1 // pred_fallthru
      _
    // Predicated region
    $region22: #{model_nlm_forward.6} parent=1 // pred_check
      _
    $region23: #{model_nlm_forward.6} parent=1 // pred_check_branch
      %34 = sbr.rel (0) target = $region25
    $region24: #{model_nlm_forward.6} parent=1 // pred_region
      _
    $region25: #{model_nlm_forward.6} parent=1 // pred_fallthru
      _
    // Predicated region
    $region26: #{model_nlm_forward.6} parent=1 // pred_check
      _
    $region27: #{model_nlm_forward.6} parent=1 // pred_check_branch
      %36 = sbr.rel (0) target = $region29
    $region28: #{model_nlm_forward.6} parent=1 // pred_region
      _
    $region29: #{model_nlm_forward.6} parent=1 // pred_fallthru
      _
    // Predicated region
    $region30: #{model_nlm_forward.6} parent=1 // pred_check
      _
    $region31: #{model_nlm_forward.6} parent=1 // pred_check_branch
      %38 = sbr.rel (0) target = $region33
    $region32: #{model_nlm_forward.6} parent=1 // pred_region
      _
    $region33: #{model_nlm_forward.6} parent=1 // pred_fallthru
      _
    // Predicated region
    $region34: #{model_nlm_forward.6} parent=1 // pred_check
      _
    $region35: #{model_nlm_forward.6} parent=1 // pred_check_branch
      %40 = sbr.rel (0) target = $region37
    $region36: #{model_nlm_forward.6} parent=1 // pred_region
      _
    $region37: #{model_nlm_forward.6} parent=1 // pred_fallthru
      _
    // Predicated region
    $region38: #{model_nlm_forward.6} parent=1 // pred_check
      _
    $region39: #{model_nlm_forward.6} parent=1 // pred_check_branch
      %42 = sbr.rel (0) target = $region41
    $region40: #{model_nlm_forward.6} parent=1 // pred_region
      _
    $region41: #{model_nlm_forward.6} parent=1 // pred_fallthru
      _
    // Predicated region
    $region42: #{model_nlm_forward.6} parent=1 // pred_check
      _
    $region43: #{model_nlm_forward.6} parent=1 // pred_check_branch
      %44 = sbr.rel (0) target = $region45
    $region44: #{model_nlm_forward.6} parent=1 // pred_region
      _
    $region45: #{model_nlm_forward.6} parent=1 // pred_fallthru
      _
    // Predicated region
    $region46: #{model_nlm_forward.6} parent=1 // pred_check
      _
    $region47: #{model_nlm_forward.6} parent=1 // pred_check_branch
      %46 = sbr.rel (0) target = $region49
    $region48: #{model_nlm_forward.6} parent=1 // pred_region
      _
    $region49: #{model_nlm_forward.6} parent=1 // pred_fallthru
      _
    %v47 = vld [vmem:[%s0] sm:$0xff]
    %v48 = vld [vmem:[%s0 + $0x8] sm:$0xff]
    %v49 = vld [vmem:[%s0 + $0x10] sm:$0xff]
    %v50 = vld [vmem:[%s1] sm:$0xff]
    %v51 = vld [vmem:[%s2] sm:$0xff]
    %53 = vset.pattern.permute.xlu0 0
    %54 = vperm.xlu0 %53, %v51
    %v55 = vpop.permute.xlu0 %54
    %vm57 = vcmask 195584
    %v59 = vsel %vm57, %v50, 0
    %61 = vmatpush.msra.mxu0 0.0
    %62 = vmatpush.msra.mxu0 0.0
    %63 = vmatpush.msra.mxu0 0.0
    %64 = vmatpush.msra.mxu0 0.0
    %65 = vmatpush.msra.mxu0 0.0
    %66 = vmatpush.msra.mxu0 0.0
    %67 = vmatpush.msra.mxu0 0.0
    %68 = vmatpush.msra.mxu0 0.0
    %69 = vmatpush.msra.mxu0 0.0
    %70 = vmatpush.msra.mxu0 0.0
    %71 = vmatpush.msra.mxu0 0.0
    %72 = vmatpush.msra.mxu0 0.0
    %73 = vmatpush.msra.mxu0 0.0
    %74 = vmatpush.msra.mxu0 %v49
    %75 = vmatpush.msra.mxu0 %v48
    %76 = vmatpush.msra.mxu0 %v47
    %77 = vmatmul.f32.gmra.mxu0 %v59
    %v78 = vpop.f32.mrf.mxu0
    %v79 = vadd.f32 %v55, %v78
    %80 = vdwg.mxu0
    %v81 = vxor.u32 %v79, 2147483648
    %v82 = vmul.f32 %v81, 1.442695
    %v83 = vpow.pop %v82
    %v84 = vadd.f32 %v83, 1.0
    %v85 = vrcp.pop %v84
    %v86 = vmul.f32 %v84, %v85
    %v87 = vsub.f32 1.0, %v86
    %v88 = vmul.f32 %v85, %v87
    %v89 = vadd.f32 %v85, %v88
    %vm90 = vweird.f32 %v84
    %vm91 = vweird.f32 %v85
    %vm92 = vmor %vm90, %vm91
    %v93 = vsel %vm92, %v85, %v89
    %v94 = vand.u32 2147483647, %v84
    %vm95 = vcmp.eq.f32.partialorder %v94, 8.507059e+37
    %v96 = vand.u32 %v84, 2147483648
    %v97 = vor.u32 1.1754944e-38, %v96
    %v98 = vsel %vm95, %v97, %v93
    %v99 = vmul.f32 1.0, %v98
    %vm100 = vcmask 15360
    %101 = vst.msk [vmem:[#allocation2] sm:$0xff] %vm100, %v99
    %v102 = vld [vmem:[%s3] sm:$0xff]
    %v103 = vld [vmem:[%s3 + $0x8] sm:$0xff]
    %v104 = vld [vmem:[%s3 + $0x10] sm:$0xff]
    %v105 = vld [vmem:[%s3 + $0x18] sm:$0xff]
    %v106 = vld [vmem:[%s4] sm:$0xff]
    %v107 = vld [vmem:[%s5] sm:$0xff]
    %109 = vset.pattern.permute.xlu0 0
    %110 = vperm.xlu0 %109, %v107
    %v111 = vpop.permute.xlu0 %110
    %vm113 = vcmask 261120
    %v115 = vsel %vm113, %v106, 0
    %117 = vmatpush.msra.mxu0 0.0
    %118 = vmatpush.msra.mxu0 0.0
    %119 = vmatpush.msra.mxu0 0.0
    %120 = vmatpush.msra.mxu0 0.0
    %121 = vmatpush.msra.mxu0 0.0
    %122 = vmatpush.msra.mxu0 0.0
    %123 = vmatpush.msra.mxu0 0.0
    %124 = vmatpush.msra.mxu0 0.0
    %125 = vmatpush.msra.mxu0 0.0
    %126 = vmatpush.msra.mxu0 0.0
    %127 = vmatpush.msra.mxu0 0.0
    %128 = vmatpush.msra.mxu0 0.0
    %129 = vmatpush.msra.mxu0 %v105
    %130 = vmatpush.msra.mxu0 %v104
    %131 = vmatpush.msra.mxu0 %v103
    %132 = vmatpush.msra.mxu0 %v102
    %133 = vmatmul.f32.gmra.mxu0 %v115
    %v134 = vpop.f32.mrf.mxu0
    %v135 = vadd.f32 %v111, %v134
    %136 = vdwg.mxu0
    %v137 = vxor.u32 %v135, 2147483648
    %v138 = vmul.f32 %v137, 1.442695
    %v139 = vpow.pop %v138
    %v140 = vadd.f32 %v139, 1.0
    %v141 = vrcp.pop %v140
    %v142 = vmul.f32 %v140, %v141
    %v143 = vsub.f32 1.0, %v142
    %v144 = vmul.f32 %v141, %v143
    %v145 = vadd.f32 %v141, %v144
    %vm146 = vweird.f32 %v140
    %vm147 = vweird.f32 %v141
    %vm148 = vmor %vm146, %vm147
    %v149 = vsel %vm148, %v141, %v145
    %v150 = vand.u32 2147483647, %v140
    %vm151 = vcmp.eq.f32.partialorder %v150, 8.507059e+37
    %v152 = vand.u32 %v140, 2147483648
    %v153 = vor.u32 1.1754944e-38, %v152
    %v154 = vsel %vm151, %v153, %v149
    %v155 = vmul.f32 1.0, %v154
    %vm156 = vcmask 130048
    %157 = vst.msk [vmem:[#allocation4] sm:$0xff] %vm156, %v155
    %v158 = vld [vmem:[%s6] sm:$0xff]
    %v159 = vld [vmem:[%s6 + $0x8] sm:$0xff]
    %v160 = vld [vmem:[%s6 + $0x10] sm:$0xff]
    %v161 = vld [vmem:[%s6 + $0x18] sm:$0xff]
    %v162 = vld [vmem:[%s6 + $0x20] sm:$0xff]
    %v163 = vld [vmem:[%s6 + $0x28] sm:$0xff]
    %v164 = vld [vmem:[%s6 + $0x30] sm:$0xff]
    %v165 = vld [vmem:[%s6 + $0x38] sm:$0xff]
    %v166 = vld [vmem:[%s7] sm:$0xff]
    %v167 = vld [vmem:[%s8] sm:$0xff]
    %169 = vset.pattern.permute.xlu0 0
    %170 = vperm.xlu0 %169, %v167
    %v171 = vpop.permute.xlu0 %170
    %vm173 = vcmask 523264
    %v175 = vsel %vm173, %v166, 0
    %177 = vmatpush.msra.mxu0 0.0
    %178 = vmatpush.msra.mxu0 0.0
    %179 = vmatpush.msra.mxu0 0.0
    %180 = vmatpush.msra.mxu0 0.0
    %181 = vmatpush.msra.mxu0 0.0
    %182 = vmatpush.msra.mxu0 0.0
    %183 = vmatpush.msra.mxu0 0.0
    %184 = vmatpush.msra.mxu0 0.0
    %185 = vmatpush.msra.mxu0 %v165
    %186 = vmatpush.msra.mxu0 %v164
    %187 = vmatpush.msra.mxu0 %v163
    %188 = vmatpush.msra.mxu0 %v162
    %189 = vmatpush.msra.mxu0 %v161
    %190 = vmatpush.msra.mxu0 %v160
    %191 = vmatpush.msra.mxu0 %v159
    %192 = vmatpush.msra.mxu0 %v158
    %193 = vmatmul.f32.gmra.mxu0 %v175
    %v194 = vpop.f32.mrf.mxu0
    %v195 = vadd.f32 %v171, %v194
    %196 = vdwg.mxu0
    %v197 = vxor.u32 %v195, 2147483648
    %v198 = vmul.f32 %v197, 1.442695
    %v199 = vpow.pop %v198
    %v200 = vadd.f32 %v199, 1.0
    %v201 = vrcp.pop %v200
    %v202 = vmul.f32 %v200, %v201
    %v203 = vsub.f32 1.0, %v202
    %v204 = vmul.f32 %v201, %v203
    %v205 = vadd.f32 %v201, %v204
    %vm206 = vweird.f32 %v200
    %vm207 = vweird.f32 %v201
    %vm208 = vmor %vm206, %vm207
    %v209 = vsel %vm208, %v201, %v205
    %v210 = vand.u32 2147483647, %v200
    %vm211 = vcmp.eq.f32.partialorder %v210, 8.507059e+37
    %v212 = vand.u32 %v200, 2147483648
    %v213 = vor.u32 1.1754944e-38, %v212
    %v214 = vsel %vm211, %v213, %v209
    %v215 = vmul.f32 1.0, %v214
    %216 = vst [vmem:[%s14] sm:$0xff] %v215
    %v217 = vld [vmem:[%s9] sm:$0xff]
    %v218 = vld [vmem:[%s9 + $0x8] sm:$0xff]
    %v219 = vld [vmem:[%s9 + $0x10] sm:$0xff]
    %v220 = vld [vmem:[%s9 + $0x18] sm:$0xff]
    %v221 = vld [vmem:[%s9 + $0x20] sm:$0xff]
    %v222 = vld [vmem:[%s9 + $0x28] sm:$0xff]
    %v223 = vld [vmem:[%s9 + $0x30] sm:$0xff]
    %v224 = vld [vmem:[%s9 + $0x38] sm:$0xff]
    %v225 = vld [vmem:[%s9 + $0x40] sm:$0xff]
    %v226 = vld [vmem:[%s9 + $0x48] sm:$0xff]
    %v227 = vld [vmem:[%s9 + $0x50] sm:$0xff]
    %v228 = vld [vmem:[%s9 + $0x58] sm:$0xff]
    %v229 = vld [vmem:[%s9 + $0x60] sm:$0xff]
    %v230 = vld [vmem:[%s9 + $0x68] sm:$0xff]
    %v231 = vld [vmem:[%s9 + $0x70] sm:$0xff]
    %v232 = vld [vmem:[%s9 + $0x78] sm:$0xff]
    %v233 = vld [vmem:[%s9 + $0x80] sm:$0xff]
    %v234 = vld [vmem:[%s9 + $0x88] sm:$0xff]
    %v235 = vld [vmem:[%s9 + $0x90] sm:$0xff]
    %v236 = vld [vmem:[%s9 + $0x98] sm:$0xff]
    %v237 = vld [vmem:[%s9 + $0xa0] sm:$0xff]
    %v238 = vld [vmem:[%s9 + $0xa8] sm:$0xff]
    %v239 = vld [vmem:[%s9 + $0xb0] sm:$0xff]
    %v240 = vld [vmem:[%s9 + $0xb8] sm:$0xff]
    %v241 = vld [vmem:[%s9 + $0xc0] sm:$0xff]
    %v242 = vld [vmem:[%s9 + $0xc8] sm:$0xff]
    %v243 = vld [vmem:[%s9 + $0xd0] sm:$0xff]
    %v244 = vld [vmem:[%s9 + $0xd8] sm:$0xff]
    %v245 = vld [vmem:[%s9 + $0xe0] sm:$0xff]
    %v246 = vld [vmem:[%s9 + $0xe8] sm:$0xff]
    %v247 = vld [vmem:[%s9 + $0xf0] sm:$0xff]
    %v248 = vld [vmem:[%s9 + $0xf8] sm:$0xff]
    %v249 = vld [vmem:[%s9 + $0x100] sm:$0xff]
    %v250 = vld [vmem:[%s9 + $0x108] sm:$0xff]
    %v251 = vld [vmem:[%s9 + $0x110] sm:$0xff]
    %v252 = vld [vmem:[%s9 + $0x118] sm:$0xff]
    %v253 = vld [vmem:[%s9 + $0x120] sm:$0xff]
    %v254 = vld [vmem:[%s9 + $0x128] sm:$0xff]
    %v255 = vld [vmem:[%s9 + $0x130] sm:$0xff]
    %v256 = vld [vmem:[%s9 + $0x138] sm:$0xff]
    %v257 = vld [vmem:[%s9 + $0x140] sm:$0xff]
    %v258 = vld [vmem:[%s9 + $0x148] sm:$0xff]
    %v259 = vld [vmem:[%s9 + $0x150] sm:$0xff]
    %v260 = vld [vmem:[%s9 + $0x158] sm:$0xff]
    %v261 = vld [vmem:[%s9 + $0x160] sm:$0xff]
    %v262 = vld [vmem:[%s9 + $0x168] sm:$0xff]
    %v263 = vld [vmem:[%s9 + $0x170] sm:$0xff]
    %v264 = vld [vmem:[%s9 + $0x178] sm:$0xff]
    %v265 = vld [vmem:[%s9 + $0x180] sm:$0xff]
    %v266 = vld [vmem:[%s9 + $0x188] sm:$0xff]
    %v267 = vld [vmem:[%s9 + $0x190] sm:$0xff]
    %v268 = vld [vmem:[%s9 + $0x198] sm:$0xff]
    %v269 = vld [vmem:[%s9 + $0x1a0] sm:$0xff]
    %v270 = vld [vmem:[%s9 + $0x1a8] sm:$0xff]
    %v271 = vld [vmem:[%s9 + $0x1b0] sm:$0xff]
    %v272 = vld [vmem:[%s9 + $0x1b8] sm:$0xff]
    %v273 = vld [vmem:[%s9 + $0x1c0] sm:$0xff]
    %v274 = vld [vmem:[%s9 + $0x1c8] sm:$0xff]
    %v275 = vld [vmem:[%s9 + $0x1d0] sm:$0xff]
    %v276 = vld [vmem:[%s9 + $0x1d8] sm:$0xff]
    %v277 = vld [vmem:[%s9 + $0x1e0] sm:$0xff]
    %v278 = vld [vmem:[%s9 + $0x1e8] sm:$0xff]
    %v279 = vld [vmem:[%s9 + $0x1f0] sm:$0xff]
    %v280 = vld [vmem:[%s9 + $0x1f8] sm:$0xff]
    %v281 = vld [vmem:[%s9 + $0x200] sm:$0xff]
    %v282 = vld [vmem:[%s9 + $0x208] sm:$0xff]
    %v283 = vld [vmem:[%s9 + $0x210] sm:$0xff]
    %v284 = vld [vmem:[%s9 + $0x218] sm:$0xff]
    %v285 = vld [vmem:[%s9 + $0x220] sm:$0xff]
    %v286 = vld [vmem:[%s9 + $0x228] sm:$0xff]
    %v287 = vld [vmem:[%s9 + $0x230] sm:$0xff]
    %v288 = vld [vmem:[%s9 + $0x238] sm:$0xff]
    %v289 = vld [vmem:[%s9 + $0x240] sm:$0xff]
    %v290 = vld [vmem:[%s9 + $0x248] sm:$0xff]
    %v291 = vld [vmem:[%s9 + $0x250] sm:$0xff]
    %v292 = vld [vmem:[%s9 + $0x258] sm:$0xff]
    %v293 = vld [vmem:[%s9 + $0x260] sm:$0xff]
    %v294 = vld [vmem:[%s9 + $0x268] sm:$0xff]
    %v295 = vld [vmem:[%s9 + $0x270] sm:$0xff]
    %v296 = vld [vmem:[%s9 + $0x278] sm:$0xff]
    %v297 = vld [vmem:[%s9 + $0x280] sm:$0xff]
    %v298 = vld [vmem:[%s9 + $0x288] sm:$0xff]
    %v299 = vld [vmem:[%s9 + $0x290] sm:$0xff]
    %v300 = vld [vmem:[%s9 + $0x298] sm:$0xff]
    %v301 = vld [vmem:[%s9 + $0x2a0] sm:$0xff]
    %v302 = vld [vmem:[%s9 + $0x2a8] sm:$0xff]
    %v303 = vld [vmem:[%s9 + $0x2b0] sm:$0xff]
    %v304 = vld [vmem:[%s9 + $0x2b8] sm:$0xff]
    %v305 = vld [vmem:[%s9 + $0x2c0] sm:$0xff]
    %v306 = vld [vmem:[%s9 + $0x2c8] sm:$0xff]
    %v307 = vld [vmem:[%s9 + $0x2d0] sm:$0xff]
    %v308 = vld [vmem:[%s9 + $0x2d8] sm:$0xff]
    %v309 = vld [vmem:[%s9 + $0x2e0] sm:$0xff]
    %v310 = vld [vmem:[%s9 + $0x2e8] sm:$0xff]
    %v311 = vld [vmem:[%s9 + $0x2f0] sm:$0xff]
    %v312 = vld [vmem:[%s9 + $0x2f8] sm:$0xff]
    %v313 = vld [vmem:[%s10] sm:$0xff]
    %v314 = vld [vmem:[%s11] sm:$0xff]
    %316 = vset.pattern.permute.xlu0 0
    %317 = vperm.xlu0 %316, %v314
    %v318 = vpop.permute.xlu0 %317
    %vm320 = vcmask 785408
    %v322 = vsel %vm320, %v313, 0
    %324 = vmatpush.msra.mxu0 0.0
    %325 = vmatpush.msra.mxu0 0.0
    %326 = vmatpush.msra.mxu0 0.0
    %327 = vmatpush.msra.mxu0 0.0
    %328 = vmatpush.msra.mxu0 %v305
    %329 = vmatpush.msra.mxu0 %v297
    %330 = vmatpush.msra.mxu0 %v289
    %331 = vmatpush.msra.mxu0 %v281
    %332 = vmatpush.msra.mxu0 %v273
    %333 = vmatpush.msra.mxu0 %v265
    %334 = vmatpush.msra.mxu0 %v257
    %335 = vmatpush.msra.mxu0 %v249
    %336 = vmatpush.msra.mxu0 %v241
    %337 = vmatpush.msra.mxu0 %v233
    %338 = vmatpush.msra.mxu0 %v225
    %339 = vmatpush.msra.mxu0 %v217
    %340 = vmatmul.f32.gmra.mxu0 %v322
    %v341 = vpop.f32.mrf.mxu0
    %v342 = vadd.f32 %v318, %v341
    %343 = vdwg.mxu0
    %344 = vmatpush.msra.mxu0 0.0
    %345 = vmatpush.msra.mxu0 0.0
    %346 = vmatpush.msra.mxu0 0.0
    %347 = vmatpush.msra.mxu0 0.0
    %348 = vmatpush.msra.mxu0 %v306
    %349 = vmatpush.msra.mxu0 %v298
    %350 = vmatpush.msra.mxu0 %v290
    %351 = vmatpush.msra.mxu0 %v282
    %352 = vmatpush.msra.mxu0 %v274
    %353 = vmatpush.msra.mxu0 %v266
    %354 = vmatpush.msra.mxu0 %v258
    %355 = vmatpush.msra.mxu0 %v250
    %356 = vmatpush.msra.mxu0 %v242
    %357 = vmatpush.msra.mxu0 %v234
    %358 = vmatpush.msra.mxu0 %v226
    %359 = vmatpush.msra.mxu0 %v218
    %360 = vmatmul.f32.gmra.mxu0 %v322
    %v361 = vpop.f32.mrf.mxu0
    %v362 = vadd.f32 %v318, %v361
    %363 = vdwg.mxu0
    %364 = vmatpush.msra.mxu0 0.0
    %365 = vmatpush.msra.mxu0 0.0
    %366 = vmatpush.msra.mxu0 0.0
    %367 = vmatpush.msra.mxu0 0.0
    %368 = vmatpush.msra.mxu0 %v307
    %369 = vmatpush.msra.mxu0 %v299
    %370 = vmatpush.msra.mxu0 %v291
    %371 = vmatpush.msra.mxu0 %v283
    %372 = vmatpush.msra.mxu0 %v275
    %373 = vmatpush.msra.mxu0 %v267
    %374 = vmatpush.msra.mxu0 %v259
    %375 = vmatpush.msra.mxu0 %v251
    %376 = vmatpush.msra.mxu0 %v243
    %377 = vmatpush.msra.mxu0 %v235
    %378 = vmatpush.msra.mxu0 %v227
    %379 = vmatpush.msra.mxu0 %v219
    %380 = vmatmul.f32.gmra.mxu0 %v322
    %v381 = vpop.f32.mrf.mxu0
    %v382 = vadd.f32 %v318, %v381
    %383 = vdwg.mxu0
    %384 = vmatpush.msra.mxu0 0.0
    %385 = vmatpush.msra.mxu0 0.0
    %386 = vmatpush.msra.mxu0 0.0
    %387 = vmatpush.msra.mxu0 0.0
    %388 = vmatpush.msra.mxu0 %v308
    %389 = vmatpush.msra.mxu0 %v300
    %390 = vmatpush.msra.mxu0 %v292
    %391 = vmatpush.msra.mxu0 %v284
    %392 = vmatpush.msra.mxu0 %v276
    %393 = vmatpush.msra.mxu0 %v268
    %394 = vmatpush.msra.mxu0 %v260
    %395 = vmatpush.msra.mxu0 %v252
    %396 = vmatpush.msra.mxu0 %v244
    %397 = vmatpush.msra.mxu0 %v236
    %398 = vmatpush.msra.mxu0 %v228
    %399 = vmatpush.msra.mxu0 %v220
    %400 = vmatmul.f32.gmra.mxu0 %v322
    %v401 = vpop.f32.mrf.mxu0
    %v402 = vadd.f32 %v318, %v401
    %403 = vdwg.mxu0
    %404 = vmatpush.msra.mxu0 0.0
    %405 = vmatpush.msra.mxu0 0.0
    %406 = vmatpush.msra.mxu0 0.0
    %407 = vmatpush.msra.mxu0 0.0
    %408 = vmatpush.msra.mxu0 %v309
    %409 = vmatpush.msra.mxu0 %v301
    %410 = vmatpush.msra.mxu0 %v293
    %411 = vmatpush.msra.mxu0 %v285
    %412 = vmatpush.msra.mxu0 %v277
    %413 = vmatpush.msra.mxu0 %v269
    %414 = vmatpush.msra.mxu0 %v261
    %415 = vmatpush.msra.mxu0 %v253
    %416 = vmatpush.msra.mxu0 %v245
    %417 = vmatpush.msra.mxu0 %v237
    %418 = vmatpush.msra.mxu0 %v229
    %419 = vmatpush.msra.mxu0 %v221
    %420 = vmatmul.f32.gmra.mxu0 %v322
    %v421 = vpop.f32.mrf.mxu0
    %v422 = vadd.f32 %v318, %v421
    %423 = vdwg.mxu0
    %424 = vmatpush.msra.mxu0 0.0
    %425 = vmatpush.msra.mxu0 0.0
    %426 = vmatpush.msra.mxu0 0.0
    %427 = vmatpush.msra.mxu0 0.0
    %428 = vmatpush.msra.mxu0 %v310
    %429 = vmatpush.msra.mxu0 %v302
    %430 = vmatpush.msra.mxu0 %v294
    %431 = vmatpush.msra.mxu0 %v286
    %432 = vmatpush.msra.mxu0 %v278
    %433 = vmatpush.msra.mxu0 %v270
    %434 = vmatpush.msra.mxu0 %v262
    %435 = vmatpush.msra.mxu0 %v254
    %436 = vmatpush.msra.mxu0 %v246
    %437 = vmatpush.msra.mxu0 %v238
    %438 = vmatpush.msra.mxu0 %v230
    %439 = vmatpush.msra.mxu0 %v222
    %440 = vmatmul.f32.gmra.mxu0 %v322
    %v441 = vpop.f32.mrf.mxu0
    %v442 = vadd.f32 %v318, %v441
    %443 = vdwg.mxu0
    %444 = vmatpush.msra.mxu0 0.0
    %445 = vmatpush.msra.mxu0 0.0
    %446 = vmatpush.msra.mxu0 0.0
    %447 = vmatpush.msra.mxu0 0.0
    %448 = vmatpush.msra.mxu0 %v311
    %449 = vmatpush.msra.mxu0 %v303
    %450 = vmatpush.msra.mxu0 %v295
    %451 = vmatpush.msra.mxu0 %v287
    %452 = vmatpush.msra.mxu0 %v279
    %453 = vmatpush.msra.mxu0 %v271
    %454 = vmatpush.msra.mxu0 %v263
    %455 = vmatpush.msra.mxu0 %v255
    %456 = vmatpush.msra.mxu0 %v247
    %457 = vmatpush.msra.mxu0 %v239
    %458 = vmatpush.msra.mxu0 %v231
    %459 = vmatpush.msra.mxu0 %v223
    %460 = vmatmul.f32.gmra.mxu0 %v322
    %v461 = vpop.f32.mrf.mxu0
    %v462 = vadd.f32 %v318, %v461
    %463 = vdwg.mxu0
    %464 = vmatpush.msra.mxu0 0.0
    %465 = vmatpush.msra.mxu0 0.0
    %466 = vmatpush.msra.mxu0 0.0
    %467 = vmatpush.msra.mxu0 0.0
    %468 = vmatpush.msra.mxu0 %v312
    %469 = vmatpush.msra.mxu0 %v304
    %470 = vmatpush.msra.mxu0 %v296
    %471 = vmatpush.msra.mxu0 %v288
    %472 = vmatpush.msra.mxu0 %v280
    %473 = vmatpush.msra.mxu0 %v272
    %474 = vmatpush.msra.mxu0 %v264
    %475 = vmatpush.msra.mxu0 %v256
    %476 = vmatpush.msra.mxu0 %v248
    %477 = vmatpush.msra.mxu0 %v240
    %478 = vmatpush.msra.mxu0 %v232
    %479 = vmatpush.msra.mxu0 %v224
    %480 = vmatmul.f32.gmra.mxu0 %v322
    %v481 = vpop.f32.mrf.mxu0
    %v482 = vadd.f32 %v318, %v481
    %483 = vdwg.mxu0
    %v484 = vxor.u32 %v342, 2147483648
    %v485 = vxor.u32 %v362, 2147483648
    %v486 = vxor.u32 %v382, 2147483648
    %v487 = vxor.u32 %v402, 2147483648
    %v488 = vxor.u32 %v422, 2147483648
    %v489 = vxor.u32 %v442, 2147483648
    %v490 = vxor.u32 %v462, 2147483648
    %v491 = vxor.u32 %v482, 2147483648
    %v492 = vmul.f32 %v484, 1.442695
    %v493 = vpow.pop %v492
    %v494 = vmul.f32 %v485, 1.442695
    %v495 = vpow.pop %v494
    %v496 = vmul.f32 %v486, 1.442695
    %v497 = vpow.pop %v496
    %v498 = vmul.f32 %v487, 1.442695
    %v499 = vpow.pop %v498
    %v500 = vmul.f32 %v488, 1.442695
    %v501 = vpow.pop %v500
    %v502 = vmul.f32 %v489, 1.442695
    %v503 = vpow.pop %v502
    %v504 = vmul.f32 %v490, 1.442695
    %v505 = vpow.pop %v504
    %v506 = vmul.f32 %v491, 1.442695
    %v507 = vpow.pop %v506
    %v508 = vadd.f32 %v493, 1.0
    %v509 = vadd.f32 %v495, 1.0
    %v510 = vadd.f32 %v497, 1.0
    %v511 = vadd.f32 %v499, 1.0
    %v512 = vadd.f32 %v501, 1.0
    %v513 = vadd.f32 %v503, 1.0
    %v514 = vadd.f32 %v505, 1.0
    %v515 = vadd.f32 %v507, 1.0
    %v516 = vrcp.pop %v508
    %v517 = vmul.f32 %v508, %v516
    %v518 = vsub.f32 1.0, %v517
    %v519 = vmul.f32 %v516, %v518
    %v520 = vadd.f32 %v516, %v519
    %vm521 = vweird.f32 %v508
    %vm522 = vweird.f32 %v516
    %vm523 = vmor %vm521, %vm522
    %v524 = vsel %vm523, %v516, %v520
    %v525 = vand.u32 2147483647, %v508
    %vm526 = vcmp.eq.f32.partialorder %v525, 8.507059e+37
    %v527 = vand.u32 %v508, 2147483648
    %v528 = vor.u32 1.1754944e-38, %v527
    %v529 = vsel %vm526, %v528, %v524
    %v530 = vmul.f32 1.0, %v529
    %v531 = vrcp.pop %v509
    %v532 = vmul.f32 %v509, %v531
    %v533 = vsub.f32 1.0, %v532
    %v534 = vmul.f32 %v531, %v533
    %v535 = vadd.f32 %v531, %v534
    %vm536 = vweird.f32 %v509
    %vm537 = vweird.f32 %v531
    %vm538 = vmor %vm536, %vm537
    %v539 = vsel %vm538, %v531, %v535
    %v540 = vand.u32 2147483647, %v509
    %vm541 = vcmp.eq.f32.partialorder %v540, 8.507059e+37
    %v542 = vand.u32 %v509, 2147483648
    %v543 = vor.u32 1.1754944e-38, %v542
    %v544 = vsel %vm541, %v543, %v539
    %v545 = vmul.f32 1.0, %v544
    %v546 = vrcp.pop %v510
    %v547 = vmul.f32 %v510, %v546
    %v548 = vsub.f32 1.0, %v547
    %v549 = vmul.f32 %v546, %v548
    %v550 = vadd.f32 %v546, %v549
    %vm551 = vweird.f32 %v510
    %vm552 = vweird.f32 %v546
    %vm553 = vmor %vm551, %vm552
    %v554 = vsel %vm553, %v546, %v550
    %v555 = vand.u32 2147483647, %v510
    %vm556 = vcmp.eq.f32.partialorder %v555, 8.507059e+37
    %v557 = vand.u32 %v510, 2147483648
    %v558 = vor.u32 1.1754944e-38, %v557
    %v559 = vsel %vm556, %v558, %v554
    %v560 = vmul.f32 1.0, %v559
    %v561 = vrcp.pop %v511
    %v562 = vmul.f32 %v511, %v561
    %v563 = vsub.f32 1.0, %v562
    %v564 = vmul.f32 %v561, %v563
    %v565 = vadd.f32 %v561, %v564
    %vm566 = vweird.f32 %v511
    %vm567 = vweird.f32 %v561
    %vm568 = vmor %vm566, %vm567
    %v569 = vsel %vm568, %v561, %v565
    %v570 = vand.u32 2147483647, %v511
    %vm571 = vcmp.eq.f32.partialorder %v570, 8.507059e+37
    %v572 = vand.u32 %v511, 2147483648
    %v573 = vor.u32 1.1754944e-38, %v572
    %v574 = vsel %vm571, %v573, %v569
    %v575 = vmul.f32 1.0, %v574
    %v576 = vrcp.pop %v512
    %v577 = vmul.f32 %v512, %v576
    %v578 = vsub.f32 1.0, %v577
    %v579 = vmul.f32 %v576, %v578
    %v580 = vadd.f32 %v576, %v579
    %vm581 = vweird.f32 %v512
    %vm582 = vweird.f32 %v576
    %vm583 = vmor %vm581, %vm582
    %v584 = vsel %vm583, %v576, %v580
    %v585 = vand.u32 2147483647, %v512
    %vm586 = vcmp.eq.f32.partialorder %v585, 8.507059e+37
    %v587 = vand.u32 %v512, 2147483648
    %v588 = vor.u32 1.1754944e-38, %v587
    %v589 = vsel %vm586, %v588, %v584
    %v590 = vmul.f32 1.0, %v589
    %v591 = vrcp.pop %v513
    %v592 = vmul.f32 %v513, %v591
    %v593 = vsub.f32 1.0, %v592
    %v594 = vmul.f32 %v591, %v593
    %v595 = vadd.f32 %v591, %v594
    %vm596 = vweird.f32 %v513
    %vm597 = vweird.f32 %v591
    %vm598 = vmor %vm596, %vm597
    %v599 = vsel %vm598, %v591, %v595
    %v600 = vand.u32 2147483647, %v513
    %vm601 = vcmp.eq.f32.partialorder %v600, 8.507059e+37
    %v602 = vand.u32 %v513, 2147483648
    %v603 = vor.u32 1.1754944e-38, %v602
    %v604 = vsel %vm601, %v603, %v599
    %v605 = vmul.f32 1.0, %v604
    %v606 = vrcp.pop %v514
    %v607 = vmul.f32 %v514, %v606
    %v608 = vsub.f32 1.0, %v607
    %v609 = vmul.f32 %v606, %v608
    %v610 = vadd.f32 %v606, %v609
    %vm611 = vweird.f32 %v514
    %vm612 = vweird.f32 %v606
    %vm613 = vmor %vm611, %vm612
    %v614 = vsel %vm613, %v606, %v610
    %v615 = vand.u32 2147483647, %v514
    %vm616 = vcmp.eq.f32.partialorder %v615, 8.507059e+37
    %v617 = vand.u32 %v514, 2147483648
    %v618 = vor.u32 1.1754944e-38, %v617
    %v619 = vsel %vm616, %v618, %v614
    %v620 = vmul.f32 1.0, %v619
    %v621 = vrcp.pop %v515
    %v622 = vmul.f32 %v515, %v621
    %v623 = vsub.f32 1.0, %v622
    %v624 = vmul.f32 %v621, %v623
    %v625 = vadd.f32 %v621, %v624
    %vm626 = vweird.f32 %v515
    %vm627 = vweird.f32 %v621
    %vm628 = vmor %vm626, %vm627
    %v629 = vsel %vm628, %v621, %v625
    %v630 = vand.u32 2147483647, %v515
    %vm631 = vcmp.eq.f32.partialorder %v630, 8.507059e+37
    %v632 = vand.u32 %v515, 2147483648
    %v633 = vor.u32 1.1754944e-38, %v632
    %v634 = vsel %vm631, %v633, %v629
    %v635 = vmul.f32 1.0, %v634
    %636 = vst [vmem:[#allocation6] sm:$0xff] %v530
    %637 = vst [vmem:[#allocation6 + $0x8] sm:$0xff] %v545
    %638 = vst [vmem:[#allocation6 + $0x10] sm:$0xff] %v560
    %639 = vst [vmem:[#allocation6 + $0x18] sm:$0xff] %v575
    %640 = vst [vmem:[#allocation6 + $0x20] sm:$0xff] %v590
    %641 = vst [vmem:[#allocation6 + $0x28] sm:$0xff] %v605
    %642 = vst [vmem:[#allocation6 + $0x30] sm:$0xff] %v620
    %643 = vst [vmem:[#allocation6 + $0x38] sm:$0xff] %v635
    // Predicated region
    $region50: #{model_nlm_forward.6} parent=1 // pred_check
      _
    $region51: #{model_nlm_forward.6} parent=1 // pred_check_branch
      %645 = sbr.rel (0) target = $region53
    $region52: #{model_nlm_forward.6} parent=1 // pred_region
      %647 = vsyncadd [#allocation3], 0
      %s649 = sshll.u32 [#allocation2], 4
      %s650 = int_to_ptr.vmem [resolvable:$true] %s649
      %s651 = sshll.u32 %s12, 4
      %s652 = int_to_ptr.hbm [resolvable:$true] %s651
      %654 = dma.vmem_to_hbm [thread:$0]  %s650, 128, %s652, [#allocation3]
    $region53: #{model_nlm_forward.6} parent=1 // pred_fallthru
      _
    // Predicated region
    $region54: #{model_nlm_forward.6} parent=1 // pred_check
      _
    $region55: #{model_nlm_forward.6} parent=1 // pred_check_branch
      %656 = sbr.rel (0) target = $region57
    $region56: #{model_nlm_forward.6} parent=1 // pred_region
      %658 = vsyncadd [#allocation5], 0
      %s660 = sshll.u32 [#allocation4], 4
      %s661 = int_to_ptr.vmem [resolvable:$true] %s660
      %s662 = sshll.u32 %s13, 4
      %s663 = int_to_ptr.hbm [resolvable:$true] %s662
      %665 = dma.vmem_to_hbm [thread:$0]  %s661, 128, %s663, [#allocation5]
    $region57: #{model_nlm_forward.6} parent=1 // pred_fallthru
      _
    // Predicated region
    $region58: #{model_nlm_forward.6} parent=1 // pred_check
      _
    $region59: #{model_nlm_forward.6} parent=1 // pred_check_branch
      %667 = sbr.rel (0) target = $region61
    $region60: #{model_nlm_forward.6} parent=1 // pred_region
      _
    $region61: #{model_nlm_forward.6} parent=1 // pred_fallthru
      _
    // Predicated region
    $region62: #{model_nlm_forward.6} parent=1 // pred_check
      _
    $region63: #{model_nlm_forward.6} parent=1 // pred_check_branch
      %669 = sbr.rel (0) target = $region65
    $region64: #{model_nlm_forward.6} parent=1 // pred_region
      %671 = vsyncadd [#allocation5], 0
      %s673 = sshll.u32 [#allocation6], 4
      %s674 = int_to_ptr.vmem [resolvable:$true] %s673
      %s675 = sshll.u32 %s15, 4
      %s676 = int_to_ptr.hbm [resolvable:$true] %s675
      %678 = dma.vmem_to_hbm [thread:$0]  %s674, 1024, %s676, [#allocation5]
    $region65: #{model_nlm_forward.6} parent=1 // pred_fallthru
      _
    // Predicated region
    $region66: #{model_nlm_forward.6} parent=1 // pred_check
      _
    $region67: #{model_nlm_forward.6} parent=1 // pred_check_branch
      %680 = sbr.rel (0) target = $region69
    $region68: #{model_nlm_forward.6} parent=1 // pred_region
      %682 = dma.done [#allocation3], 128
    $region69: #{model_nlm_forward.6} parent=1 // pred_fallthru
      _
    // Predicated region
    $region70: #{model_nlm_forward.6} parent=1 // pred_check
      _
    $region71: #{model_nlm_forward.6} parent=1 // pred_check_branch
      %684 = sbr.rel (0) target = $region73
    $region72: #{model_nlm_forward.6} parent=1 // pred_region
      %686 = dma.done [#allocation5], 128
    $region73: #{model_nlm_forward.6} parent=1 // pred_fallthru
      _
    // Predicated region
    $region74: #{model_nlm_forward.6} parent=1 // pred_check
      _
    $region75: #{model_nlm_forward.6} parent=1 // pred_check_branch
      %688 = sbr.rel (0) target = $region77
    $region76: #{model_nlm_forward.6} parent=1 // pred_region
      _
    $region77: #{model_nlm_forward.6} parent=1 // pred_fallthru
      _
    // Predicated region
    $region78: #{model_nlm_forward.6} parent=1 // pred_check
      _
    $region79: #{model_nlm_forward.6} parent=1 // pred_check_branch
      %690 = sbr.rel (0) target = $region81
    $region80: #{model_nlm_forward.6} parent=1 // pred_region
      %692 = dma.done [#allocation5], 1024
    $region81: #{model_nlm_forward.6} parent=1 // pred_fallthru
      _
    %693 = vsyncpa [#allocation3], 1
    %694 = vsyncpa [#allocation5], 1

// kernel: model_nlm_forward.7
$region0: #{model_nlm_forward.7}
  #allocation0 [shape = 'u32[]', space=smem, size = 0x4, offset = 0x4, fixed_abs, tag = 'smem constant byte address 0x4 - core index']
  #allocation1 [shape = 'u32[72,128]{1,0:T(1,128)}', space=vmem, size = 0x9000, scoped, tag = 'internal scratch']
  #allocation2 [shape = 'f32[1,1]{1,0:T(1,128)S(1)}', space=vmem, size = 0x200, scoped, tag = 'scoped memory for model_nlm_forward.7']
  %s0 = inlined_call_operand.vmem [shape: f32[8,2,16], index: 0, kind: input, shape index: {}]
  %s1 = inlined_call_operand.vmem [shape: f32[8,1], index: 1, kind: input, shape index: {}]
  %s2 = inlined_call_operand.<no memory space> [shape: f32[1,1], index: 2, kind: input, shape index: {}]
  %s3 = inlined_call_operand.hbm [shape: f32[2,16], index: 3, kind: output, shape index: {}]
  %s4 = sld [smem:[#allocation0]]
  $region22: #{model_nlm_forward.7} parent=0
    _
  %s6 = ssub.s32 1, %s4
  %s7 = scalar_select 0, %s6, %s4
  %v8 = vstv %s2
  %9 = vst [vmem:[#allocation2] sm:$0x1] %v8
  $region1: #{model_nlm_forward.7} parent=0
    #allocation3 [shape = 'u8[1024]{0}', space=vmem, size = 0x400, scoped, tag = 'output window, operand 0, single buffered']
    #allocation4 [shape = 's32[1]{0}', space=sflag, size = 0x4, scoped, tag = 'scoped memory for model_nlm_forward.7']
    %10 = vsyncpa [#allocation4], 0
    // Predicated region
    $region2: #{model_nlm_forward.7} parent=1 // pred_check
      _
    $region3: #{model_nlm_forward.7} parent=1 // pred_check_branch
      %12 = sbr.rel (0) target = $region5
    $region4: #{model_nlm_forward.7} parent=1 // pred_region
      _
    $region5: #{model_nlm_forward.7} parent=1 // pred_fallthru
      _
    // Predicated region
    $region6: #{model_nlm_forward.7} parent=1 // pred_check
      _
    $region7: #{model_nlm_forward.7} parent=1 // pred_check_branch
      %14 = sbr.rel (0) target = $region9
    $region8: #{model_nlm_forward.7} parent=1 // pred_region
      _
    $region9: #{model_nlm_forward.7} parent=1 // pred_fallthru
      _
    // Predicated region
    $region10: #{model_nlm_forward.7} parent=1 // pred_check
      _
    $region11: #{model_nlm_forward.7} parent=1 // pred_check_branch
      %16 = sbr.rel (0) target = $region13
    $region12: #{model_nlm_forward.7} parent=1 // pred_region
      _
    $region13: #{model_nlm_forward.7} parent=1 // pred_fallthru
      _
    %v17 = vld [vmem:[%s0] sm:$0x3]
    %v18 = vld [vmem:[%s0 + $0x2] sm:$0x3]
    %v19 = vld [vmem:[%s0 + $0x4] sm:$0x3]
    %v20 = vld [vmem:[%s0 + $0x6] sm:$0x3]
    %v21 = vld [vmem:[%s0 + $0x8] sm:$0x3]
    %v22 = vld [vmem:[%s0 + $0xa] sm:$0x3]
    %v23 = vld [vmem:[%s0 + $0xc] sm:$0x3]
    %v24 = vld [vmem:[%s0 + $0xe] sm:$0x3]
    %v25 = vld [vmem:[%s1] sm:$0xff]
    %v27 = vrot.slane %v25, 1
    %v28 = vrot.slane %v25, 2
    %v29 = vrot.slane %v25, 3
    %v30 = vrot.slane %v25, 4
    %v31 = vrot.slane %v25, 5
    %v32 = vrot.slane %v25, 6
    %v33 = vrot.slane %v25, 7
    %v34 = vperm.slane %v25, 0
    %v35 = vperm.slane %v27, 0
    %v36 = vperm.slane %v28, 0
    %v37 = vperm.slane %v29, 0
    %v38 = vperm.slane %v30, 0
    %v39 = vperm.slane %v31, 0
    %v40 = vperm.slane %v32, 0
    %v41 = vperm.slane %v33, 0
    %42 = vset.pattern.permute.xlu0 0
    %43 = vperm.xlu0 %42, %v34
    %v44 = vpop.permute.xlu0 %43
    %46 = vset.pattern.permute.xlu0 0
    %47 = vperm.xlu0 %46, %v35
    %v48 = vpop.permute.xlu0 %47
    %50 = vset.pattern.permute.xlu0 0
    %51 = vperm.xlu0 %50, %v36
    %v52 = vpop.permute.xlu0 %51
    %54 = vset.pattern.permute.xlu0 0
    %55 = vperm.xlu0 %54, %v37
    %v56 = vpop.permute.xlu0 %55
    %58 = vset.pattern.permute.xlu0 0
    %59 = vperm.xlu0 %58, %v38
    %v60 = vpop.permute.xlu0 %59
    %62 = vset.pattern.permute.xlu0 0
    %63 = vperm.xlu0 %62, %v39
    %v64 = vpop.permute.xlu0 %63
    %66 = vset.pattern.permute.xlu0 0
    %67 = vperm.xlu0 %66, %v40
    %v68 = vpop.permute.xlu0 %67
    %70 = vset.pattern.permute.xlu0 0
    %71 = vperm.xlu0 %70, %v41
    %v72 = vpop.permute.xlu0 %71
    %v74 = vmul.f32 %v17, %v44
    %v75 = vmul.f32 %v18, %v48
    %v76 = vmul.f32 %v19, %v52
    %v77 = vmul.f32 %v20, %v56
    %v78 = vmul.f32 %v21, %v60
    %v79 = vmul.f32 %v22, %v64
    %v80 = vmul.f32 %v23, %v68
    %v81 = vmul.f32 %v24, %v72
    %vm82 = vcmask 123904
    %v83 = vsel %vm82, %v74, 0.0
    %v84 = vsel %vm82, %v75, 0.0
    %v85 = vadd.f32 %v83, %v84
    %v86 = vsel %vm82, %v76, 0.0
    %v87 = vadd.f32 %v85, %v86
    %v88 = vsel %vm82, %v77, 0.0
    %v89 = vadd.f32 %v87, %v88
    %v90 = vsel %vm82, %v78, 0.0
    %v91 = vadd.f32 %v89, %v90
    %v92 = vsel %vm82, %v79, 0.0
    %v93 = vadd.f32 %v91, %v92
    %v94 = vsel %vm82, %v80, 0.0
    %v95 = vadd.f32 %v93, %v94
    %v96 = vsel %vm82, %v81, 0.0
    %v97 = vadd.f32 %v95, %v96
    %v98 = vld [vmem:[#allocation2] sm:$0x1]
    %v100 = vperm.slane %v98, 0
    %101 = vset.pattern.permute.xlu0 0
    %102 = vperm.xlu0 %101, %v100
    %v103 = vpop.permute.xlu0 %102
    %v105 = vadd.f32 %v97, %v103
    %v106 = vsel %vm82, %v105, -inf
    %107 = vmax.xlane.f32.xlu0 %v106
    %v108 = vpop.xlane.xlu0 %107
    %v109 = vsub.f32 %v105, %v108
    %v110 = vmul.f32 %v109, 1.442695
    %v111 = vpow.pop %v110
    %v112 = vsel %vm82, %v111, 0.0
    %113 = vadd.xlane.f32.xlu0 %v112
    %v114 = vpop.xlane.xlu0 %113
    %v115 = vrcp.pop %v114
    %v116 = vmul.f32 %v114, %v115
    %v117 = vsub.f32 1.0, %v116
    %v118 = vmul.f32 %v115, %v117
    %v119 = vadd.f32 %v115, %v118
    %vm120 = vweird.f32 %v114
    %vm121 = vweird.f32 %v115
    %vm122 = vmor %vm120, %vm121
    %v123 = vsel %vm122, %v115, %v119
    %v124 = vand.u32 2147483647, %v114
    %vm125 = vcmp.eq.f32.partialorder %v124, 8.507059e+37
    %v126 = vand.u32 %v114, 2147483648
    %v127 = vor.u32 1.1754944e-38, %v126
    %v128 = vsel %vm125, %v127, %v123
    %v129 = vmul.f32 %v111, %v128
    %v130 = vmax.f32 %v129, 1e-20
    %131 = vst.msk [vmem:[#allocation3] sm:$0x3] %vm82, %v130
    // Predicated region
    $region14: #{model_nlm_forward.7} parent=1 // pred_check
      _
    $region15: #{model_nlm_forward.7} parent=1 // pred_check_branch
      %133 = sbr.rel (0) target = $region17
    $region16: #{model_nlm_forward.7} parent=1 // pred_region
      %135 = vsyncadd [#allocation4], 0
      %s137 = sshll.u32 [#allocation3], 4
      %s138 = int_to_ptr.vmem [resolvable:$true] %s137
      %s139 = sshll.u32 %s3, 4
      %s140 = int_to_ptr.hbm [resolvable:$true] %s139
      %142 = dma.vmem_to_hbm [thread:$0]  %s138, 32, %s140, [#allocation4]
    $region17: #{model_nlm_forward.7} parent=1 // pred_fallthru
      _
    // Predicated region
    $region18: #{model_nlm_forward.7} parent=1 // pred_check
      _
    $region19: #{model_nlm_forward.7} parent=1 // pred_check_branch
      %144 = sbr.rel (0) target = $region21
    $region20: #{model_nlm_forward.7} parent=1 // pred_region
      %146 = dma.done [#allocation4], 32
    $region21: #{model_nlm_forward.7} parent=1 // pred_fallthru
      _
    %147 = vsyncpa [#allocation4], 1

</llo_original>
